<compile_context>
chip_gen: v7x
topology: tpu7x:2x2x1
jax: 0.10.0
libtpu: 0.0.40
codegen_flags: <defaults>
</compile_context>

<pallas_src>
import jax
import jax.numpy as jnp
from jax.experimental import pallas as pl
from jax.experimental.pallas import tpu as pltpu

EPS = 1e-5  # nn.BatchNorm1d default


def _pad_lanes(x):
    """Zero-pad the lane (L) axis by 1 on each side: (N, C, L) -> (N, C, L+2). Stays in vregs."""
    N, C, _ = x.shape
    z = jnp.zeros((N, C, 1), x.dtype)
    return jnp.concatenate([z, x, z], axis=2)


def _conv3_bn_relu(x, w_ref, b_ref, g_ref, be_ref):
    """Conv1d(k=3, pad=1) + bias + training-mode BatchNorm1d + ReLU in NCL / L-on-lanes.

    x:      (N, C, L) f32 value
    w_ref:  (3, Co, C) tap-major conv weight (each tap is a ready (Co, C) matmul LHS)
    b_ref / g_ref / be_ref: (Co, 1) conv bias / BN gamma / BN beta
    returns (N, Co, L) f32 value
    """
    N, _, L = x.shape
    f32 = jnp.float32

    xp = _pad_lanes(x)                      # (N, C, L+2)
    x_lm1 = xp[:, :, 0:L]                   # x[l-1], zero at l == 0
    x_lp1 = xp[:, :, 2:L + 2]               # x[l+1], zero at l == L-1
    w_l = w_ref[0]                          # pairs with x[l-1]
    w_c = w_ref[1]                          # pairs with x[l]
    w_r = w_ref[2]                          # pairs with x[l+1]

    # Three accumulating MXU dots per sample; the result keeps L on lanes, no transposes and
    # no scratch-ref round-trips.
    # TODO(synk): for production batch sizes fold this static loop into a grid axis.
    accs = []
    for n in range(N):
        acc_n = (jnp.dot(w_l, x_lm1[n], preferred_element_type=f32)
                 + jnp.dot(w_c, x[n], preferred_element_type=f32)
                 + jnp.dot(w_r, x_lp1[n], preferred_element_type=f32))
        accs.append(acc_n)
    acc = jnp.stack(accs, axis=0) + b_ref[...]               # (N, Co, L); (Co,1) bias bcast

    # Training-mode BN: biased batch stats over (N, L), two-pass for numerical robustness,
    # folded into one per-channel scale/shift so the hot sweep is a single FMA + max.
    inv_cnt = 1.0 / float(N * L)
    mean = jnp.sum(jnp.sum(acc, axis=2, keepdims=True), axis=0, keepdims=True) * inv_cnt
    d = acc - mean
    var = jnp.sum(jnp.sum(d * d, axis=2, keepdims=True), axis=0, keepdims=True) * inv_cnt
    scale = g_ref[...] * jax.lax.rsqrt(var + EPS)            # (1, Co, 1)
    shift = be_ref[...] - mean * scale                       # (1, Co, 1)
    return jnp.maximum(acc * scale + shift, 0.0)


def fused_down_kernel(x_ref, w1_ref, b1_ref, g1_ref, be1_ref,
                      w2_ref, b2_ref, g2_ref, be2_ref, o_ref, idx_ref):
    """x_ref: (N, Cin, L).  o_ref / idx_ref: (N, Cout, L//2).  PyTorch NCL layout throughout."""
    N, Co, Lh = o_ref.shape
    L = 2 * Lh
    f32 = jnp.float32

    x = x_ref[...]
    h = _conv3_bn_relu(x, w1_ref, b1_ref, g1_ref, be1_ref)   # (N, Co, L)
    y = _conv3_bn_relu(h, w2_ref, b2_ref, g2_ref, be2_ref)   # (N, Co, L)

    # ---------------- MaxPool1d(kernel=2, stride=2, return_indices=True) ----------------
    # Stride-2 lane compaction via two exact 0/1 selection matmuls on the (idle) MXU;
    # multiplying by 1.0/0.0 and adding exact zeros is bit-exact, so values and the
    # comparison behave like a direct gather.
    # TODO(synk): at production L replace with a strided lane load / roll-based swizzle so
    # the (L, L//2) selection matrices are not needed.
    row = jax.lax.broadcasted_iota(jnp.int32, (L, Lh), 0)
    col = jax.lax.broadcasted_iota(jnp.int32, (L, Lh), 1)
    sel_even = (row == 2 * col).astype(f32)                  # picks y[..., 2j]
    sel_odd = (row == 2 * col + 1).astype(f32)               # picks y[..., 2j+1]

    y2 = y.reshape(N * Co, L)
    a = jnp.dot(y2, sel_even, preferred_element_type=f32).reshape(N, Co, Lh)
    b = jnp.dot(y2, sel_odd, preferred_element_type=f32).reshape(N, Co, Lh)

    take_first = a >= b                     # PyTorch keeps the earlier index on ties
    o_ref[...] = jnp.where(take_first, a, b)
    base = 2 * jax.lax.broadcasted_iota(jnp.int32, (N, Co, Lh), 2)
    idx_ref[...] = base + (1 - take_first.astype(jnp.int32))


def down_forward(x_ncl, params):
    """x_ncl: (N, Cin, L) f32 (PyTorch NCL).

    Returns (pooled (N, Cout, L//2) f32, indices (N, Cout, L//2) int32), also NCL.
    """
    w1, b1, g1, be1, w2, b2, g2, be2 = params
    N, Cin, L = x_ncl.shape
    Cout = w1.shape[0]
    assert L % 2 == 0
    Lh = L // 2

    # Only the (tiny) parameters are re-laid-out; activations keep the PyTorch layout.
    w1k = jnp.transpose(w1, (2, 0, 1))        # (3, Cout, Cin), tap-major
    w2k = jnp.transpose(w2, (2, 0, 1))        # (3, Cout, Cout)
    b1k, g1k, be1k = (p.reshape(Cout, 1) for p in (b1, g1, be1))
    b2k, g2k, be2k = (p.reshape(Cout, 1) for p in (b2, g2, be2))

    vmem = pl.BlockSpec(memory_space=pltpu.MemorySpace.VMEM)
    pooled, idx = pl.pallas_call(
        fused_down_kernel,
        out_shape=(
            jax.ShapeDtypeStruct((N, Cout, Lh), jnp.float32),
            jax.ShapeDtypeStruct((N, Cout, Lh), jnp.int32),
        ),
        in_specs=[vmem] * 9,
        out_specs=(vmem, vmem),
    )(x_ncl, w1k, b1k, g1k, be1k, w2k, b2k, g2k, be2k)
    return pooled, idx


# ------------------------ pure-JAX reference (PyTorch semantics) ------------------------
def _ref_conv_bn_relu(x, w, b, g, be):
    """x: (N, C, L); w: (Co, C, 3) (PyTorch Conv1d layout); b/g/be: (Co,)."""
    L = x.shape[-1]
    xp = jnp.pad(x, ((0, 0), (0, 0), (1, 1)))
    h = sum(jnp.einsum('ncl,oc->nol', xp[:, :, k:k + L], w[:, :, k]) for k in range(3))
    h = h + b[None, :, None]
    m = h.mean(axis=(0, 2), keepdims=True)
    v = ((h - m) ** 2).mean(axis=(0, 2), keepdims=True)
    return jnp.maximum((h - m) * jax.lax.rsqrt(v + EPS) * g[None, :, None]
                       + be[None, :, None], 0.0)


def _ref_down(x_ncl, params):
    w1, b1, g1, be1, w2, b2, g2, be2 = params
    h = _ref_conv_bn_relu(x_ncl, w1, b1, g1, be1)
    y = _ref_conv_bn_relu(h, w2, b2, g2, be2)
    a = y[:, :, 0::2]
    bb = y[:, :, 1::2]
    take_first = a >= bb
    pooled = jnp.where(take_first, a, bb)
    base = 2 * jax.lax.broadcasted_iota(jnp.int32, a.shape, 2)
    idx = base + (1 - take_first.astype(jnp.int32))
    return pooled, idx, y


if __name__ == "__main__":
    N, IN_CH, OUT_CH, L = 2, 4, 8, 16

    key = jax.random.PRNGKey(0)
    ks = jax.random.split(key, 9)
    # Deterministic synthetic parameters (PyTorch nn.Conv1d / nn.BatchNorm1d layouts).
    w1 = 0.3 * jax.random.normal(ks[0], (OUT_CH, IN_CH, 3), jnp.float32)   # conv1 weight
    b1 = 0.1 * jax.random.normal(ks[1], (OUT_CH,), jnp.float32)            # conv1 bias
    g1 = 1.0 + 0.1 * jax.random.normal(ks[2], (OUT_CH,), jnp.float32)      # BN1 gamma
    be1 = 0.1 * jax.random.normal(ks[3], (OUT_CH,), jnp.float32)           # BN1 beta
    w2 = 0.3 * jax.random.normal(ks[4], (OUT_CH, OUT_CH, 3), jnp.float32)  # conv2 weight
    b2 = 0.1 * jax.random.normal(ks[5], (OUT_CH,), jnp.float32)
    g2 = 1.0 + 0.1 * jax.random.normal(ks[6], (OUT_CH,), jnp.float32)
    be2 = 0.1 * jax.random.normal(ks[7], (OUT_CH,), jnp.float32)
    params = (w1, b1, g1, be1, w2, b2, g2, be2)

    x = jax.random.normal(ks[8], (N, IN_CH, L), jnp.float32)  # PyTorch NCL input

    pooled, indices = down_forward(x, params)
    jax.block_until_ready((pooled, indices))

    ref_pooled, ref_idx, ref_y = _ref_down(x, params)
    assert pooled.shape == (N, OUT_CH, L // 2) and indices.shape == (N, OUT_CH, L // 2)
    assert bool(jnp.allclose(pooled, ref_pooled, atol=1e-4, rtol=1e-4))
    # Indices must point at the window max (tolerance-aware, avoids fp near-tie flakiness)...
    picked = jnp.take_along_axis(ref_y, indices, axis=2)
    assert bool(jnp.allclose(picked, ref_pooled, atol=1e-4, rtol=1e-4))
    # ...and away from numerical ties they must match PyTorch's keep-first argmax exactly.
    decisive = jnp.abs(ref_y[:, :, 0::2] - ref_y[:, :, 1::2]) > 1e-5
    assert bool(jnp.all(jnp.where(decisive, indices == ref_idx, True)))

    print("KERNEL_OK")
</pallas_src>

<mosaic_0001>
module attributes {stable_mosaic.version = 11 : i64} {
  func.func @fused_down_kernel(%arg0: memref<2x4x16xf32, #tpu.memory_space<vmem>>, %arg1: memref<3x8x4xf32, #tpu.memory_space<vmem>>, %arg2: memref<8x1xf32, #tpu.memory_space<vmem>>, %arg3: memref<8x1xf32, #tpu.memory_space<vmem>>, %arg4: memref<8x1xf32, #tpu.memory_space<vmem>>, %arg5: memref<3x8x8xf32, #tpu.memory_space<vmem>>, %arg6: memref<8x1xf32, #tpu.memory_space<vmem>>, %arg7: memref<8x1xf32, #tpu.memory_space<vmem>>, %arg8: memref<8x1xf32, #tpu.memory_space<vmem>>, %arg9: memref<2x8x8xf32, #tpu.memory_space<vmem>>, %arg10: memref<2x8x8xi32, #tpu.memory_space<vmem>>) attributes {dimension_semantics = [], scalar_prefetch = 0 : i64, scratch_operands = 0 : i64, tpu.core_type = #tpu.core_type<tc>} {
    %c0 = arith.constant 0 : index
    %c0_0 = arith.constant 0 : index
    %c0_1 = arith.constant 0 : index
    %0 = vector.load %arg0[%c0, %c0_0, %c0_1] : memref<2x4x16xf32, #tpu.memory_space<vmem>>, vector<2x4x16xf32>
    %cst = arith.constant 0.000000e+00 : f32
    %1 = vector.broadcast %cst : f32 to vector<2x4x1xf32>
    %2 = tpu.concatenate %1, %0, %1 in 2 : vector<2x4x1xf32>, vector<2x4x16xf32>, vector<2x4x1xf32> -> vector<2x4x18xf32>
    %3 = vector.extract_strided_slice %2 {offsets = [0, 0, 0], sizes = [2, 4, 16], strides = [1, 1, 1]} : vector<2x4x18xf32> to vector<2x4x16xf32>
    %4 = vector.extract_strided_slice %2 {offsets = [0, 0, 2], sizes = [2, 4, 16], strides = [1, 1, 1]} : vector<2x4x18xf32> to vector<2x4x16xf32>
    %c0_2 = arith.constant 0 : index
    %c0_3 = arith.constant 0 : index
    %c0_4 = arith.constant 0 : index
    %5 = vector.load %arg1[%c0_2, %c0_3, %c0_4] : memref<3x8x4xf32, #tpu.memory_space<vmem>>, vector<1x8x4xf32>
    %6 = vector.shape_cast %5 : vector<1x8x4xf32> to vector<8x4xf32>
    %c1 = arith.constant 1 : index
    %c0_5 = arith.constant 0 : index
    %c0_6 = arith.constant 0 : index
    %7 = vector.load %arg1[%c1, %c0_5, %c0_6] : memref<3x8x4xf32, #tpu.memory_space<vmem>>, vector<1x8x4xf32>
    %8 = vector.shape_cast %7 : vector<1x8x4xf32> to vector<8x4xf32>
    %c2 = arith.constant 2 : index
    %c0_7 = arith.constant 0 : index
    %c0_8 = arith.constant 0 : index
    %9 = vector.load %arg1[%c2, %c0_7, %c0_8] : memref<3x8x4xf32, #tpu.memory_space<vmem>>, vector<1x8x4xf32>
    %10 = vector.shape_cast %9 : vector<1x8x4xf32> to vector<8x4xf32>
    %11 = vector.extract_strided_slice %3 {offsets = [0, 0, 0], sizes = [1, 4, 16], strides = [1, 1, 1]} : vector<2x4x16xf32> to vector<1x4x16xf32>
    %12 = vector.shape_cast %11 : vector<1x4x16xf32> to vector<4x16xf32>
    %cst_9 = arith.constant dense<0.000000e+00> : vector<8x16xf32>
    %13 = tpu.matmul %6, %12, %cst_9 {dimension_numbers = #tpu.dot_dimension_numbers<[1], [0], [0], [1], [0, 0, 1, 1], [], []>} : vector<8x4xf32>, vector<4x16xf32>, vector<8x16xf32> -> vector<8x16xf32>
    %14 = vector.extract_strided_slice %0 {offsets = [0, 0, 0], sizes = [1, 4, 16], strides = [1, 1, 1]} : vector<2x4x16xf32> to vector<1x4x16xf32>
    %15 = vector.shape_cast %14 : vector<1x4x16xf32> to vector<4x16xf32>
    %cst_10 = arith.constant dense<0.000000e+00> : vector<8x16xf32>
    %16 = tpu.matmul %8, %15, %cst_10 {dimension_numbers = #tpu.dot_dimension_numbers<[1], [0], [0], [1], [0, 0, 1, 1], [], []>} : vector<8x4xf32>, vector<4x16xf32>, vector<8x16xf32> -> vector<8x16xf32>
    %17 = arith.addf %13, %16 : vector<8x16xf32>
    %18 = vector.extract_strided_slice %4 {offsets = [0, 0, 0], sizes = [1, 4, 16], strides = [1, 1, 1]} : vector<2x4x16xf32> to vector<1x4x16xf32>
    %19 = vector.shape_cast %18 : vector<1x4x16xf32> to vector<4x16xf32>
    %cst_11 = arith.constant dense<0.000000e+00> : vector<8x16xf32>
    %20 = tpu.matmul %10, %19, %cst_11 {dimension_numbers = #tpu.dot_dimension_numbers<[1], [0], [0], [1], [0, 0, 1, 1], [], []>} : vector<8x4xf32>, vector<4x16xf32>, vector<8x16xf32> -> vector<8x16xf32>
    %21 = arith.addf %17, %20 : vector<8x16xf32>
    %22 = vector.extract_strided_slice %3 {offsets = [1, 0, 0], sizes = [1, 4, 16], strides = [1, 1, 1]} : vector<2x4x16xf32> to vector<1x4x16xf32>
    %23 = vector.shape_cast %22 : vector<1x4x16xf32> to vector<4x16xf32>
    %cst_12 = arith.constant dense<0.000000e+00> : vector<8x16xf32>
    %24 = tpu.matmul %6, %23, %cst_12 {dimension_numbers = #tpu.dot_dimension_numbers<[1], [0], [0], [1], [0, 0, 1, 1], [], []>} : vector<8x4xf32>, vector<4x16xf32>, vector<8x16xf32> -> vector<8x16xf32>
    %25 = vector.extract_strided_slice %0 {offsets = [1, 0, 0], sizes = [1, 4, 16], strides = [1, 1, 1]} : vector<2x4x16xf32> to vector<1x4x16xf32>
    %26 = vector.shape_cast %25 : vector<1x4x16xf32> to vector<4x16xf32>
    %cst_13 = arith.constant dense<0.000000e+00> : vector<8x16xf32>
    %27 = tpu.matmul %8, %26, %cst_13 {dimension_numbers = #tpu.dot_dimension_numbers<[1], [0], [0], [1], [0, 0, 1, 1], [], []>} : vector<8x4xf32>, vector<4x16xf32>, vector<8x16xf32> -> vector<8x16xf32>
    %28 = arith.addf %24, %27 : vector<8x16xf32>
    %29 = vector.extract_strided_slice %4 {offsets = [1, 0, 0], sizes = [1, 4, 16], strides = [1, 1, 1]} : vector<2x4x16xf32> to vector<1x4x16xf32>
    %30 = vector.shape_cast %29 : vector<1x4x16xf32> to vector<4x16xf32>
    %cst_14 = arith.constant dense<0.000000e+00> : vector<8x16xf32>
    %31 = tpu.matmul %10, %30, %cst_14 {dimension_numbers = #tpu.dot_dimension_numbers<[1], [0], [0], [1], [0, 0, 1, 1], [], []>} : vector<8x4xf32>, vector<4x16xf32>, vector<8x16xf32> -> vector<8x16xf32>
    %32 = arith.addf %28, %31 : vector<8x16xf32>
    %33 = vector.shape_cast %21 : vector<8x16xf32> to vector<1x8x16xf32>
    %34 = vector.shape_cast %32 : vector<8x16xf32> to vector<1x8x16xf32>
    %35 = tpu.concatenate %33, %34 in 0 : vector<1x8x16xf32>, vector<1x8x16xf32> -> vector<2x8x16xf32>
    %c0_15 = arith.constant 0 : index
    %c0_16 = arith.constant 0 : index
    %36 = vector.load %arg2[%c0_15, %c0_16] : memref<8x1xf32, #tpu.memory_space<vmem>>, vector<8x1xf32>
    %37 = vector.shape_cast %36 : vector<8x1xf32> to vector<1x8x1xf32>
    %38 = vector.broadcast %37 : vector<1x8x1xf32> to vector<2x8x16xf32>
    %39 = arith.addf %35, %38 : vector<2x8x16xf32>
    %cst_17 = arith.constant dense<0.000000e+00> : vector<2x8xf32>
    %40 = vector.multi_reduction <add>, %39, %cst_17 [2] : vector<2x8x16xf32> to vector<2x8xf32>
    %41 = vector.shape_cast %40 : vector<2x8xf32> to vector<2x8x1xf32>
    %cst_18 = arith.constant dense<0.000000e+00> : vector<8x1xf32>
    %42 = vector.multi_reduction <add>, %41, %cst_18 [0] : vector<2x8x1xf32> to vector<8x1xf32>
    %43 = vector.shape_cast %42 : vector<8x1xf32> to vector<1x8x1xf32>
    %cst_19 = arith.constant 3.125000e-02 : f32
    %44 = vector.broadcast %cst_19 : f32 to vector<1x8x1xf32>
    %45 = arith.mulf %43, %44 : vector<1x8x1xf32>
    %46 = vector.broadcast %45 : vector<1x8x1xf32> to vector<2x8x16xf32>
    %47 = arith.subf %39, %46 : vector<2x8x16xf32>
    %48 = arith.mulf %47, %47 : vector<2x8x16xf32>
    %cst_20 = arith.constant dense<0.000000e+00> : vector<2x8xf32>
    %49 = vector.multi_reduction <add>, %48, %cst_20 [2] : vector<2x8x16xf32> to vector<2x8xf32>
    %50 = vector.shape_cast %49 : vector<2x8xf32> to vector<2x8x1xf32>
    %cst_21 = arith.constant dense<0.000000e+00> : vector<8x1xf32>
    %51 = vector.multi_reduction <add>, %50, %cst_21 [0] : vector<2x8x1xf32> to vector<8x1xf32>
    %52 = vector.shape_cast %51 : vector<8x1xf32> to vector<1x8x1xf32>
    %cst_22 = arith.constant 3.125000e-02 : f32
    %53 = vector.broadcast %cst_22 : f32 to vector<1x8x1xf32>
    %54 = arith.mulf %52, %53 : vector<1x8x1xf32>
    %c0_23 = arith.constant 0 : index
    %c0_24 = arith.constant 0 : index
    %55 = vector.load %arg3[%c0_23, %c0_24] : memref<8x1xf32, #tpu.memory_space<vmem>>, vector<8x1xf32>
    %cst_25 = arith.constant 9.99999974E-6 : f32
    %56 = vector.broadcast %cst_25 : f32 to vector<1x8x1xf32>
    %57 = arith.addf %54, %56 : vector<1x8x1xf32>
    %58 = math.rsqrt %57 : vector<1x8x1xf32>
    %59 = vector.shape_cast %55 : vector<8x1xf32> to vector<1x8x1xf32>
    %60 = arith.mulf %59, %58 : vector<1x8x1xf32>
    %c0_26 = arith.constant 0 : index
    %c0_27 = arith.constant 0 : index
    %61 = vector.load %arg4[%c0_26, %c0_27] : memref<8x1xf32, #tpu.memory_space<vmem>>, vector<8x1xf32>
    %62 = arith.mulf %45, %60 : vector<1x8x1xf32>
    %63 = vector.shape_cast %61 : vector<8x1xf32> to vector<1x8x1xf32>
    %64 = arith.subf %63, %62 : vector<1x8x1xf32>
    %65 = vector.broadcast %60 : vector<1x8x1xf32> to vector<2x8x16xf32>
    %66 = arith.mulf %39, %65 : vector<2x8x16xf32>
    %67 = vector.broadcast %64 : vector<1x8x1xf32> to vector<2x8x16xf32>
    %68 = arith.addf %66, %67 : vector<2x8x16xf32>
    %cst_28 = arith.constant 0.000000e+00 : f32
    %69 = vector.broadcast %cst_28 : f32 to vector<2x8x16xf32>
    %70 = arith.maximumf %68, %69 : vector<2x8x16xf32>
    %cst_29 = arith.constant 0.000000e+00 : f32
    %71 = vector.broadcast %cst_29 : f32 to vector<2x8x1xf32>
    %72 = tpu.concatenate %71, %70, %71 in 2 : vector<2x8x1xf32>, vector<2x8x16xf32>, vector<2x8x1xf32> -> vector<2x8x18xf32>
    %73 = vector.extract_strided_slice %72 {offsets = [0, 0, 0], sizes = [2, 8, 16], strides = [1, 1, 1]} : vector<2x8x18xf32> to vector<2x8x16xf32>
    %74 = vector.extract_strided_slice %72 {offsets = [0, 0, 2], sizes = [2, 8, 16], strides = [1, 1, 1]} : vector<2x8x18xf32> to vector<2x8x16xf32>
    %c0_30 = arith.constant 0 : index
    %c0_31 = arith.constant 0 : index
    %c0_32 = arith.constant 0 : index
    %75 = vector.load %arg5[%c0_30, %c0_31, %c0_32] : memref<3x8x8xf32, #tpu.memory_space<vmem>>, vector<1x8x8xf32>
    %76 = vector.shape_cast %75 : vector<1x8x8xf32> to vector<8x8xf32>
    %c1_33 = arith.constant 1 : index
    %c0_34 = arith.constant 0 : index
    %c0_35 = arith.constant 0 : index
    %77 = vector.load %arg5[%c1_33, %c0_34, %c0_35] : memref<3x8x8xf32, #tpu.memory_space<vmem>>, vector<1x8x8xf32>
    %78 = vector.shape_cast %77 : vector<1x8x8xf32> to vector<8x8xf32>
    %c2_36 = arith.constant 2 : index
    %c0_37 = arith.constant 0 : index
    %c0_38 = arith.constant 0 : index
    %79 = vector.load %arg5[%c2_36, %c0_37, %c0_38] : memref<3x8x8xf32, #tpu.memory_space<vmem>>, vector<1x8x8xf32>
    %80 = vector.shape_cast %79 : vector<1x8x8xf32> to vector<8x8xf32>
    %81 = vector.extract_strided_slice %73 {offsets = [0, 0, 0], sizes = [1, 8, 16], strides = [1, 1, 1]} : vector<2x8x16xf32> to vector<1x8x16xf32>
    %82 = vector.shape_cast %81 : vector<1x8x16xf32> to vector<8x16xf32>
    %cst_39 = arith.constant dense<0.000000e+00> : vector<8x16xf32>
    %83 = tpu.matmul %76, %82, %cst_39 {dimension_numbers = #tpu.dot_dimension_numbers<[1], [0], [0], [1], [0, 0, 1, 1], [], []>} : vector<8x8xf32>, vector<8x16xf32>, vector<8x16xf32> -> vector<8x16xf32>
    %84 = vector.extract_strided_slice %70 {offsets = [0, 0, 0], sizes = [1, 8, 16], strides = [1, 1, 1]} : vector<2x8x16xf32> to vector<1x8x16xf32>
    %85 = vector.shape_cast %84 : vector<1x8x16xf32> to vector<8x16xf32>
    %cst_40 = arith.constant dense<0.000000e+00> : vector<8x16xf32>
    %86 = tpu.matmul %78, %85, %cst_40 {dimension_numbers = #tpu.dot_dimension_numbers<[1], [0], [0], [1], [0, 0, 1, 1], [], []>} : vector<8x8xf32>, vector<8x16xf32>, vector<8x16xf32> -> vector<8x16xf32>
    %87 = arith.addf %83, %86 : vector<8x16xf32>
    %88 = vector.extract_strided_slice %74 {offsets = [0, 0, 0], sizes = [1, 8, 16], strides = [1, 1, 1]} : vector<2x8x16xf32> to vector<1x8x16xf32>
    %89 = vector.shape_cast %88 : vector<1x8x16xf32> to vector<8x16xf32>
    %cst_41 = arith.constant dense<0.000000e+00> : vector<8x16xf32>
    %90 = tpu.matmul %80, %89, %cst_41 {dimension_numbers = #tpu.dot_dimension_numbers<[1], [0], [0], [1], [0, 0, 1, 1], [], []>} : vector<8x8xf32>, vector<8x16xf32>, vector<8x16xf32> -> vector<8x16xf32>
    %91 = arith.addf %87, %90 : vector<8x16xf32>
    %92 = vector.extract_strided_slice %73 {offsets = [1, 0, 0], sizes = [1, 8, 16], strides = [1, 1, 1]} : vector<2x8x16xf32> to vector<1x8x16xf32>
    %93 = vector.shape_cast %92 : vector<1x8x16xf32> to vector<8x16xf32>
    %cst_42 = arith.constant dense<0.000000e+00> : vector<8x16xf32>
    %94 = tpu.matmul %76, %93, %cst_42 {dimension_numbers = #tpu.dot_dimension_numbers<[1], [0], [0], [1], [0, 0, 1, 1], [], []>} : vector<8x8xf32>, vector<8x16xf32>, vector<8x16xf32> -> vector<8x16xf32>
    %95 = vector.extract_strided_slice %70 {offsets = [1, 0, 0], sizes = [1, 8, 16], strides = [1, 1, 1]} : vector<2x8x16xf32> to vector<1x8x16xf32>
    %96 = vector.shape_cast %95 : vector<1x8x16xf32> to vector<8x16xf32>
    %cst_43 = arith.constant dense<0.000000e+00> : vector<8x16xf32>
    %97 = tpu.matmul %78, %96, %cst_43 {dimension_numbers = #tpu.dot_dimension_numbers<[1], [0], [0], [1], [0, 0, 1, 1], [], []>} : vector<8x8xf32>, vector<8x16xf32>, vector<8x16xf32> -> vector<8x16xf32>
    %98 = arith.addf %94, %97 : vector<8x16xf32>
    %99 = vector.extract_strided_slice %74 {offsets = [1, 0, 0], sizes = [1, 8, 16], strides = [1, 1, 1]} : vector<2x8x16xf32> to vector<1x8x16xf32>
    %100 = vector.shape_cast %99 : vector<1x8x16xf32> to vector<8x16xf32>
    %cst_44 = arith.constant dense<0.000000e+00> : vector<8x16xf32>
    %101 = tpu.matmul %80, %100, %cst_44 {dimension_numbers = #tpu.dot_dimension_numbers<[1], [0], [0], [1], [0, 0, 1, 1], [], []>} : vector<8x8xf32>, vector<8x16xf32>, vector<8x16xf32> -> vector<8x16xf32>
    %102 = arith.addf %98, %101 : vector<8x16xf32>
    %103 = vector.shape_cast %91 : vector<8x16xf32> to vector<1x8x16xf32>
    %104 = vector.shape_cast %102 : vector<8x16xf32> to vector<1x8x16xf32>
    %105 = tpu.concatenate %103, %104 in 0 : vector<1x8x16xf32>, vector<1x8x16xf32> -> vector<2x8x16xf32>
    %c0_45 = arith.constant 0 : index
    %c0_46 = arith.constant 0 : index
    %106 = vector.load %arg6[%c0_45, %c0_46] : memref<8x1xf32, #tpu.memory_space<vmem>>, vector<8x1xf32>
    %107 = vector.shape_cast %106 : vector<8x1xf32> to vector<1x8x1xf32>
    %108 = vector.broadcast %107 : vector<1x8x1xf32> to vector<2x8x16xf32>
    %109 = arith.addf %105, %108 : vector<2x8x16xf32>
    %cst_47 = arith.constant dense<0.000000e+00> : vector<2x8xf32>
    %110 = vector.multi_reduction <add>, %109, %cst_47 [2] : vector<2x8x16xf32> to vector<2x8xf32>
    %111 = vector.shape_cast %110 : vector<2x8xf32> to vector<2x8x1xf32>
    %cst_48 = arith.constant dense<0.000000e+00> : vector<8x1xf32>
    %112 = vector.multi_reduction <add>, %111, %cst_48 [0] : vector<2x8x1xf32> to vector<8x1xf32>
    %113 = vector.shape_cast %112 : vector<8x1xf32> to vector<1x8x1xf32>
    %cst_49 = arith.constant 3.125000e-02 : f32
    %114 = vector.broadcast %cst_49 : f32 to vector<1x8x1xf32>
    %115 = arith.mulf %113, %114 : vector<1x8x1xf32>
    %116 = vector.broadcast %115 : vector<1x8x1xf32> to vector<2x8x16xf32>
    %117 = arith.subf %109, %116 : vector<2x8x16xf32>
    %118 = arith.mulf %117, %117 : vector<2x8x16xf32>
    %cst_50 = arith.constant dense<0.000000e+00> : vector<2x8xf32>
    %119 = vector.multi_reduction <add>, %118, %cst_50 [2] : vector<2x8x16xf32> to vector<2x8xf32>
    %120 = vector.shape_cast %119 : vector<2x8xf32> to vector<2x8x1xf32>
    %cst_51 = arith.constant dense<0.000000e+00> : vector<8x1xf32>
    %121 = vector.multi_reduction <add>, %120, %cst_51 [0] : vector<2x8x1xf32> to vector<8x1xf32>
    %122 = vector.shape_cast %121 : vector<8x1xf32> to vector<1x8x1xf32>
    %cst_52 = arith.constant 3.125000e-02 : f32
    %123 = vector.broadcast %cst_52 : f32 to vector<1x8x1xf32>
    %124 = arith.mulf %122, %123 : vector<1x8x1xf32>
    %c0_53 = arith.constant 0 : index
    %c0_54 = arith.constant 0 : index
    %125 = vector.load %arg7[%c0_53, %c0_54] : memref<8x1xf32, #tpu.memory_space<vmem>>, vector<8x1xf32>
    %cst_55 = arith.constant 9.99999974E-6 : f32
    %126 = vector.broadcast %cst_55 : f32 to vector<1x8x1xf32>
    %127 = arith.addf %124, %126 : vector<1x8x1xf32>
    %128 = math.rsqrt %127 : vector<1x8x1xf32>
    %129 = vector.shape_cast %125 : vector<8x1xf32> to vector<1x8x1xf32>
    %130 = arith.mulf %129, %128 : vector<1x8x1xf32>
    %c0_56 = arith.constant 0 : index
    %c0_57 = arith.constant 0 : index
    %131 = vector.load %arg8[%c0_56, %c0_57] : memref<8x1xf32, #tpu.memory_space<vmem>>, vector<8x1xf32>
    %132 = arith.mulf %115, %130 : vector<1x8x1xf32>
    %133 = vector.shape_cast %131 : vector<8x1xf32> to vector<1x8x1xf32>
    %134 = arith.subf %133, %132 : vector<1x8x1xf32>
    %135 = vector.broadcast %130 : vector<1x8x1xf32> to vector<2x8x16xf32>
    %136 = arith.mulf %109, %135 : vector<2x8x16xf32>
    %137 = vector.broadcast %134 : vector<1x8x1xf32> to vector<2x8x16xf32>
    %138 = arith.addf %136, %137 : vector<2x8x16xf32>
    %cst_58 = arith.constant 0.000000e+00 : f32
    %139 = vector.broadcast %cst_58 : f32 to vector<2x8x16xf32>
    %140 = arith.maximumf %138, %139 : vector<2x8x16xf32>
    %141 = tpu.iota {dimensions = array<i32: 0>} : vector<16x8xi32>
    %142 = tpu.iota {dimensions = array<i32: 1>} : vector<16x8xi32>
    %c2_i32 = arith.constant 2 : i32
    %143 = vector.broadcast %c2_i32 : i32 to vector<16x8xi32>
    %144 = arith.muli %143, %142 : vector<16x8xi32>
    %145 = arith.cmpi eq, %141, %144 : vector<16x8xi32>
    %146 = arith.extui %145 : vector<16x8xi1> to vector<16x8xi32>
    %147 = arith.sitofp %146 : vector<16x8xi32> to vector<16x8xf32>
    %c2_i32_59 = arith.constant 2 : i32
    %148 = vector.broadcast %c2_i32_59 : i32 to vector<16x8xi32>
    %149 = arith.muli %148, %142 : vector<16x8xi32>
    %c1_i32 = arith.constant 1 : i32
    %150 = vector.broadcast %c1_i32 : i32 to vector<16x8xi32>
    %151 = arith.addi %149, %150 : vector<16x8xi32>
    %152 = arith.cmpi eq, %141, %151 : vector<16x8xi32>
    %153 = arith.extui %152 : vector<16x8xi1> to vector<16x8xi32>
    %154 = arith.sitofp %153 : vector<16x8xi32> to vector<16x8xf32>
    %155 = vector.shape_cast %140 : vector<2x8x16xf32> to vector<16x16xf32>
    %cst_60 = arith.constant dense<0.000000e+00> : vector<16x8xf32>
    %156 = tpu.matmul %155, %147, %cst_60 {dimension_numbers = #tpu.dot_dimension_numbers<[1], [0], [0], [1], [0, 0, 1, 1], [], []>} : vector<16x16xf32>, vector<16x8xf32>, vector<16x8xf32> -> vector<16x8xf32>
    %157 = vector.shape_cast %156 : vector<16x8xf32> to vector<2x8x8xf32>
    %cst_61 = arith.constant dense<0.000000e+00> : vector<16x8xf32>
    %158 = tpu.matmul %155, %154, %cst_61 {dimension_numbers = #tpu.dot_dimension_numbers<[1], [0], [0], [1], [0, 0, 1, 1], [], []>} : vector<16x16xf32>, vector<16x8xf32>, vector<16x8xf32> -> vector<16x8xf32>
    %159 = vector.shape_cast %158 : vector<16x8xf32> to vector<2x8x8xf32>
    %160 = arith.cmpf oge, %157, %159 : vector<2x8x8xf32>
    %161 = arith.select %160, %157, %159 : vector<2x8x8xi1>, vector<2x8x8xf32>
    %c0_62 = arith.constant 0 : index
    %c0_63 = arith.constant 0 : index
    %c0_64 = arith.constant 0 : index
    %162 = vector.load %arg9[%c0_62, %c0_63, %c0_64] : memref<2x8x8xf32, #tpu.memory_space<vmem>>, vector<2x8x8xf32>
    tpu.vector_store %arg9[%c0_62, %c0_63, %c0_64], %161 {strides = array<i32>} : memref<2x8x8xf32, #tpu.memory_space<vmem>>, vector<2x8x8xf32>,
    %163 = tpu.iota {dimensions = array<i32: 2>} : vector<2x8x8xi32>
    %c2_i32_65 = arith.constant 2 : i32
    %164 = vector.broadcast %c2_i32_65 : i32 to vector<2x8x8xi32>
    %165 = arith.muli %164, %163 : vector<2x8x8xi32>
    %166 = arith.extui %160 : vector<2x8x8xi1> to vector<2x8x8xi32>
    %c1_i32_66 = arith.constant 1 : i32
    %167 = vector.broadcast %c1_i32_66 : i32 to vector<2x8x8xi32>
    %168 = arith.subi %167, %166 : vector<2x8x8xi32>
    %169 = arith.addi %165, %168 : vector<2x8x8xi32>
    %c0_67 = arith.constant 0 : index
    %c0_68 = arith.constant 0 : index
    %c0_69 = arith.constant 0 : index
    %170 = vector.load %arg10[%c0_67, %c0_68, %c0_69] : memref<2x8x8xi32, #tpu.memory_space<vmem>>, vector<2x8x8xi32>
    tpu.vector_store %arg10[%c0_67, %c0_68, %c0_69], %169 {strides = array<i32>} : memref<2x8x8xi32, #tpu.memory_space<vmem>>, vector<2x8x8xi32>,
    return
  }
}

</mosaic_0001>

<llo_original>
// kernel: tpu_custom_call.1
$region0: #{tpu_custom_call.1}
  #allocation0 [shape = 'u32[]', space=smem, size = 0x4, offset = 0x4, fixed_abs, tag = 'smem constant byte address 0x4 - core index']
  #allocation1 [shape = 'u32[144,128]{1,0:T(1,128)}', space=vmem, size = 0x12000, scoped, tag = 'internal scratch']
  %s0 = inlined_call_operand.vmem [shape: f32[2,4,16], index: 0, kind: input, shape index: {}]
  %s1 = inlined_call_operand.vmem [shape: f32[3,8,4], index: 1, kind: input, shape index: {}]
  %s2 = inlined_call_operand.vmem [shape: f32[8,1], index: 2, kind: input, shape index: {}]
  %s3 = inlined_call_operand.vmem [shape: f32[8,1], index: 3, kind: input, shape index: {}]
  %s4 = inlined_call_operand.vmem [shape: f32[8,1], index: 4, kind: input, shape index: {}]
  %s5 = inlined_call_operand.vmem [shape: f32[3,8,8], index: 5, kind: input, shape index: {}]
  %s6 = inlined_call_operand.vmem [shape: f32[8,1], index: 6, kind: input, shape index: {}]
  %s7 = inlined_call_operand.vmem [shape: f32[8,1], index: 7, kind: input, shape index: {}]
  %s8 = inlined_call_operand.vmem [shape: f32[8,1], index: 8, kind: input, shape index: {}]
  %s9 = inlined_call_operand.hbm [shape: f32[2,8,8], index: 9, kind: output, shape index: {0}]
  %s10 = inlined_call_operand.hbm [shape: s32[2,8,8], index: 10, kind: output, shape index: {1}]
  %11 = xla_tuple %s9, %s10
  %s12 = sld [smem:[#allocation0]]
  $region54: #{tpu_custom_call.1} parent=0
    _
  %s14 = ssub.s32 1, %s12
  %s15 = scalar_select 0, %s14, %s12
  $region1: #{tpu_custom_call.1} parent=0
    #allocation2 [shape = 'u8[8192]{0}', space=vmem, size = 0x2000, scoped, tag = 'output window, operand 0, single buffered']
    #allocation3 [shape = 's32[1]{0}', space=sflag, size = 0x4, scoped, tag = 'scoped memory for tpu_custom_call.1']
    #allocation4 [shape = 'u8[8192]{0}', space=vmem, size = 0x2000, scoped, tag = 'output window, operand 1, single buffered']
    #allocation5 [shape = 's32[1]{0}', space=sflag, size = 0x4, scoped, tag = 'scoped memory for tpu_custom_call.1']
    %16 = vsyncpa [#allocation3], 0
    %17 = vsyncpa [#allocation5], 0
    // Predicated region
    $region2: #{tpu_custom_call.1} parent=1 // pred_check
      _
    $region3: #{tpu_custom_call.1} parent=1 // pred_check_branch
      %19 = sbr.rel (0) target = $region5
    $region4: #{tpu_custom_call.1} parent=1 // pred_region
      _
    $region5: #{tpu_custom_call.1} parent=1 // pred_fallthru
      _
    // Predicated region
    $region6: #{tpu_custom_call.1} parent=1 // pred_check
      _
    $region7: #{tpu_custom_call.1} parent=1 // pred_check_branch
      %21 = sbr.rel (0) target = $region9
    $region8: #{tpu_custom_call.1} parent=1 // pred_region
      _
    $region9: #{tpu_custom_call.1} parent=1 // pred_fallthru
      _
    // Predicated region
    $region10: #{tpu_custom_call.1} parent=1 // pred_check
      _
    $region11: #{tpu_custom_call.1} parent=1 // pred_check_branch
      %23 = sbr.rel (0) target = $region13
    $region12: #{tpu_custom_call.1} parent=1 // pred_region
      _
    $region13: #{tpu_custom_call.1} parent=1 // pred_fallthru
      _
    // Predicated region
    $region14: #{tpu_custom_call.1} parent=1 // pred_check
      _
    $region15: #{tpu_custom_call.1} parent=1 // pred_check_branch
      %25 = sbr.rel (0) target = $region17
    $region16: #{tpu_custom_call.1} parent=1 // pred_region
      _
    $region17: #{tpu_custom_call.1} parent=1 // pred_fallthru
      _
    // Predicated region
    $region18: #{tpu_custom_call.1} parent=1 // pred_check
      _
    $region19: #{tpu_custom_call.1} parent=1 // pred_check_branch
      %27 = sbr.rel (0) target = $region21
    $region20: #{tpu_custom_call.1} parent=1 // pred_region
      _
    $region21: #{tpu_custom_call.1} parent=1 // pred_fallthru
      _
    // Predicated region
    $region22: #{tpu_custom_call.1} parent=1 // pred_check
      _
    $region23: #{tpu_custom_call.1} parent=1 // pred_check_branch
      %29 = sbr.rel (0) target = $region25
    $region24: #{tpu_custom_call.1} parent=1 // pred_region
      _
    $region25: #{tpu_custom_call.1} parent=1 // pred_fallthru
      _
    // Predicated region
    $region26: #{tpu_custom_call.1} parent=1 // pred_check
      _
    $region27: #{tpu_custom_call.1} parent=1 // pred_check_branch
      %31 = sbr.rel (0) target = $region29
    $region28: #{tpu_custom_call.1} parent=1 // pred_region
      _
    $region29: #{tpu_custom_call.1} parent=1 // pred_fallthru
      _
    // Predicated region
    $region30: #{tpu_custom_call.1} parent=1 // pred_check
      _
    $region31: #{tpu_custom_call.1} parent=1 // pred_check_branch
      %33 = sbr.rel (0) target = $region33
    $region32: #{tpu_custom_call.1} parent=1 // pred_region
      _
    $region33: #{tpu_custom_call.1} parent=1 // pred_fallthru
      _
    // Predicated region
    $region34: #{tpu_custom_call.1} parent=1 // pred_check
      _
    $region35: #{tpu_custom_call.1} parent=1 // pred_check_branch
      %35 = sbr.rel (0) target = $region37
    $region36: #{tpu_custom_call.1} parent=1 // pred_region
      _
    $region37: #{tpu_custom_call.1} parent=1 // pred_fallthru
      _
    %v36 = vld [vmem:[%s0] sm:$0xf]
    %v37 = vld [vmem:[%s0 + $0x4] sm:$0xf]
    %40 = vrot.lane.b32.xlu0 %v36, 1
    %v41 = vpop.permute.xlu0 %40
    %42 = vrot.lane.b32.xlu0 %v37, 1
    %v43 = vpop.permute.xlu0 %42
    %vm46 = vcmask 7168
    %v47 = vsel %vm46, 0.0, %v41
    %v48 = vsel %vm46, 0.0, %v43
    %vm49 = vcmask 138240
    %v50 = vsel %vm49, %v47, 0.0
    %v51 = vsel %vm49, %v48, 0.0
    %v52 = vld [vmem:[%s1] sm:$0xff]
    %s53 = scalar_lea.vmem %s1, 8
    %v54 = vld [vmem:[%s53] sm:$0xff]
    %s55 = scalar_lea.vmem %s1, 16
    %v56 = vld [vmem:[%s55] sm:$0xff]
    %vm57 = vcmask 31744
    %v59 = vsel %vm57, %v54, 0
    %vm61 = vcmask 1043456
    %v62 = vsel %vm61, %v36, 0
    %64 = vmatprep.subr.mxu0 0.0
    %65 = vmatpush1.msra.mxu0 %v62
    %66 = vmatprep.subr.mxu0 0.0
    %67 = vmatpush1.msra.mxu0 0.0
    %68 = vmatprep.subr.mxu0 0.0
    %69 = vmatpush1.msra.mxu0 0.0
    %70 = vmatprep.subr.mxu0 0.0
    %71 = vmatpush1.msra.mxu0 0.0
    %72 = vmatprep.subr.mxu0 0.0
    %73 = vmatpush1.msra.mxu0 0.0
    %74 = vmatprep.subr.mxu0 0.0
    %75 = vmatpush1.msra.mxu0 0.0
    %76 = vmatprep.subr.mxu0 0.0
    %77 = vmatpush1.msra.mxu0 0.0
    %78 = vmatprep.subr.mxu0 0.0
    %79 = vmatpush1.msra.mxu0 0.0
    %80 = vmatprep.subr.mxu0 0.0
    %81 = vmatpush1.msra.mxu0 0.0
    %82 = vmatprep.subr.mxu0 0.0
    %83 = vmatpush1.msra.mxu0 0.0
    %84 = vmatprep.subr.mxu0 0.0
    %85 = vmatpush1.msra.mxu0 0.0
    %86 = vmatprep.subr.mxu0 0.0
    %87 = vmatpush1.msra.mxu0 0.0
    %88 = vmatprep.subr.mxu0 0.0
    %89 = vmatpush1.msra.mxu0 0.0
    %90 = vmatprep.subr.mxu0 0.0
    %91 = vmatpush1.msra.mxu0 0.0
    %92 = vmatprep.subr.mxu0 0.0
    %93 = vmatpush1.msra.mxu0 0.0
    %94 = vmatprep.subr.mxu0 0.0
    %95 = vmatpush1.msra.mxu0 0.0
    %96 = vmatprep.subr.mxu0 0.0
    %97 = vmatpush1.msra.mxu0 0.0
    %98 = vmatprep.subr.mxu0 0.0
    %99 = vmatpush1.msra.mxu0 0.0
    %100 = vmatprep.subr.mxu0 0.0
    %101 = vmatpush1.msra.mxu0 0.0
    %102 = vmatprep.subr.mxu0 0.0
    %103 = vmatpush1.msra.mxu0 0.0
    %104 = vmatprep.subr.mxu0 0.0
    %105 = vmatpush1.msra.mxu0 0.0
    %106 = vmatprep.subr.mxu0 0.0
    %107 = vmatpush1.msra.mxu0 0.0
    %108 = vmatprep.subr.mxu0 0.0
    %109 = vmatpush1.msra.mxu0 0.0
    %110 = vmatprep.subr.mxu0 0.0
    %111 = vmatpush1.msra.mxu0 0.0
    %112 = vmatprep.subr.mxu0 0.0
    %113 = vmatpush1.msra.mxu0 0.0
    %114 = vmatprep.subr.mxu0 0.0
    %115 = vmatpush1.msra.mxu0 0.0
    %116 = vmatprep.subr.mxu0 0.0
    %117 = vmatpush1.msra.mxu0 0.0
    %118 = vmatprep.subr.mxu0 0.0
    %119 = vmatpush1.msra.mxu0 0.0
    %120 = vmatprep.subr.mxu0 0.0
    %121 = vmatpush1.msra.mxu0 0.0
    %122 = vmatprep.subr.mxu0 0.0
    %123 = vmatpush1.msra.mxu0 0.0
    %124 = vmatprep.subr.mxu0 0.0
    %125 = vmatpush1.msra.mxu0 0.0
    %126 = vmatprep.subr.mxu0 0.0
    %127 = vmatpush1.msra.mxu0 0.0
    %128 = vmatprep.mubr.f32.mxu0 0.0
    %129 = vmatmul.mubr.f32.gmra.mrb[0].mxu0 %v59
    %v130 = vpop.f32.mrb[0].mxu0
    %v131 = vadd.f32 0.0, %v130
    %v132 = vpop.f32.mrb[0].mxu0
    %133 = vdwg.mxu0
    %v135 = vsel %vm57, %v52, 0
    %v138 = vsel %vm61, %v50, 0
    %140 = vmatprep.subr.mxu0 0.0
    %141 = vmatpush1.msra.mxu0 %v138
    %142 = vmatprep.subr.mxu0 0.0
    %143 = vmatpush1.msra.mxu0 0.0
    %144 = vmatprep.subr.mxu0 0.0
    %145 = vmatpush1.msra.mxu0 0.0
    %146 = vmatprep.subr.mxu0 0.0
    %147 = vmatpush1.msra.mxu0 0.0
    %148 = vmatprep.subr.mxu0 0.0
    %149 = vmatpush1.msra.mxu0 0.0
    %150 = vmatprep.subr.mxu0 0.0
    %151 = vmatpush1.msra.mxu0 0.0
    %152 = vmatprep.subr.mxu0 0.0
    %153 = vmatpush1.msra.mxu0 0.0
    %154 = vmatprep.subr.mxu0 0.0
    %155 = vmatpush1.msra.mxu0 0.0
    %156 = vmatprep.subr.mxu0 0.0
    %157 = vmatpush1.msra.mxu0 0.0
    %158 = vmatprep.subr.mxu0 0.0
    %159 = vmatpush1.msra.mxu0 0.0
    %160 = vmatprep.subr.mxu0 0.0
    %161 = vmatpush1.msra.mxu0 0.0
    %162 = vmatprep.subr.mxu0 0.0
    %163 = vmatpush1.msra.mxu0 0.0
    %164 = vmatprep.subr.mxu0 0.0
    %165 = vmatpush1.msra.mxu0 0.0
    %166 = vmatprep.subr.mxu0 0.0
    %167 = vmatpush1.msra.mxu0 0.0
    %168 = vmatprep.subr.mxu0 0.0
    %169 = vmatpush1.msra.mxu0 0.0
    %170 = vmatprep.subr.mxu0 0.0
    %171 = vmatpush1.msra.mxu0 0.0
    %172 = vmatprep.subr.mxu0 0.0
    %173 = vmatpush1.msra.mxu0 0.0
    %174 = vmatprep.subr.mxu0 0.0
    %175 = vmatpush1.msra.mxu0 0.0
    %176 = vmatprep.subr.mxu0 0.0
    %177 = vmatpush1.msra.mxu0 0.0
    %178 = vmatprep.subr.mxu0 0.0
    %179 = vmatpush1.msra.mxu0 0.0
    %180 = vmatprep.subr.mxu0 0.0
    %181 = vmatpush1.msra.mxu0 0.0
    %182 = vmatprep.subr.mxu0 0.0
    %183 = vmatpush1.msra.mxu0 0.0
    %184 = vmatprep.subr.mxu0 0.0
    %185 = vmatpush1.msra.mxu0 0.0
    %186 = vmatprep.subr.mxu0 0.0
    %187 = vmatpush1.msra.mxu0 0.0
    %188 = vmatprep.subr.mxu0 0.0
    %189 = vmatpush1.msra.mxu0 0.0
    %190 = vmatprep.subr.mxu0 0.0
    %191 = vmatpush1.msra.mxu0 0.0
    %192 = vmatprep.subr.mxu0 0.0
    %193 = vmatpush1.msra.mxu0 0.0
    %194 = vmatprep.subr.mxu0 0.0
    %195 = vmatpush1.msra.mxu0 0.0
    %196 = vmatprep.subr.mxu0 0.0
    %197 = vmatpush1.msra.mxu0 0.0
    %198 = vmatprep.subr.mxu0 0.0
    %199 = vmatpush1.msra.mxu0 0.0
    %200 = vmatprep.subr.mxu0 0.0
    %201 = vmatpush1.msra.mxu0 0.0
    %202 = vmatprep.subr.mxu0 0.0
    %203 = vmatpush1.msra.mxu0 0.0
    %204 = vmatprep.mubr.f32.mxu0 0.0
    %205 = vmatmul.mubr.f32.gmra.mrb[0].mxu0 %v135
    %v206 = vpop.f32.mrb[0].mxu0
    %v207 = vadd.f32 %v131, %v206
    %v208 = vpop.f32.mrb[0].mxu0
    %209 = vdwg.mxu0
    %210 = vrot.lane.b32.xlu0 %v50, 126
    %v211 = vpop.permute.xlu0 %210
    %v213 = vsel %vm57, %v56, 0
    %v215 = vsel %vm61, %v211, 0
    %217 = vmatprep.subr.mxu0 0.0
    %218 = vmatpush1.msra.mxu0 %v215
    %219 = vmatprep.subr.mxu0 0.0
    %220 = vmatpush1.msra.mxu0 0.0
    %221 = vmatprep.subr.mxu0 0.0
    %222 = vmatpush1.msra.mxu0 0.0
    %223 = vmatprep.subr.mxu0 0.0
    %224 = vmatpush1.msra.mxu0 0.0
    %225 = vmatprep.subr.mxu0 0.0
    %226 = vmatpush1.msra.mxu0 0.0
    %227 = vmatprep.subr.mxu0 0.0
    %228 = vmatpush1.msra.mxu0 0.0
    %229 = vmatprep.subr.mxu0 0.0
    %230 = vmatpush1.msra.mxu0 0.0
    %231 = vmatprep.subr.mxu0 0.0
    %232 = vmatpush1.msra.mxu0 0.0
    %233 = vmatprep.subr.mxu0 0.0
    %234 = vmatpush1.msra.mxu0 0.0
    %235 = vmatprep.subr.mxu0 0.0
    %236 = vmatpush1.msra.mxu0 0.0
    %237 = vmatprep.subr.mxu0 0.0
    %238 = vmatpush1.msra.mxu0 0.0
    %239 = vmatprep.subr.mxu0 0.0
    %240 = vmatpush1.msra.mxu0 0.0
    %241 = vmatprep.subr.mxu0 0.0
    %242 = vmatpush1.msra.mxu0 0.0
    %243 = vmatprep.subr.mxu0 0.0
    %244 = vmatpush1.msra.mxu0 0.0
    %245 = vmatprep.subr.mxu0 0.0
    %246 = vmatpush1.msra.mxu0 0.0
    %247 = vmatprep.subr.mxu0 0.0
    %248 = vmatpush1.msra.mxu0 0.0
    %249 = vmatprep.subr.mxu0 0.0
    %250 = vmatpush1.msra.mxu0 0.0
    %251 = vmatprep.subr.mxu0 0.0
    %252 = vmatpush1.msra.mxu0 0.0
    %253 = vmatprep.subr.mxu0 0.0
    %254 = vmatpush1.msra.mxu0 0.0
    %255 = vmatprep.subr.mxu0 0.0
    %256 = vmatpush1.msra.mxu0 0.0
    %257 = vmatprep.subr.mxu0 0.0
    %258 = vmatpush1.msra.mxu0 0.0
    %259 = vmatprep.subr.mxu0 0.0
    %260 = vmatpush1.msra.mxu0 0.0
    %261 = vmatprep.subr.mxu0 0.0
    %262 = vmatpush1.msra.mxu0 0.0
    %263 = vmatprep.subr.mxu0 0.0
    %264 = vmatpush1.msra.mxu0 0.0
    %265 = vmatprep.subr.mxu0 0.0
    %266 = vmatpush1.msra.mxu0 0.0
    %267 = vmatprep.subr.mxu0 0.0
    %268 = vmatpush1.msra.mxu0 0.0
    %269 = vmatprep.subr.mxu0 0.0
    %270 = vmatpush1.msra.mxu0 0.0
    %271 = vmatprep.subr.mxu0 0.0
    %272 = vmatpush1.msra.mxu0 0.0
    %273 = vmatprep.subr.mxu0 0.0
    %274 = vmatpush1.msra.mxu0 0.0
    %275 = vmatprep.subr.mxu0 0.0
    %276 = vmatpush1.msra.mxu0 0.0
    %277 = vmatprep.subr.mxu0 0.0
    %278 = vmatpush1.msra.mxu0 0.0
    %279 = vmatprep.subr.mxu0 0.0
    %280 = vmatpush1.msra.mxu0 0.0
    %281 = vmatprep.mubr.f32.mxu0 0.0
    %282 = vmatmul.mubr.f32.gmra.mrb[0].mxu0 %v213
    %v283 = vpop.f32.mrb[0].mxu0
    %v284 = vadd.f32 0.0, %v283
    %v285 = vpop.f32.mrb[0].mxu0
    %286 = vdwg.mxu0
    %v287 = vadd.f32 %v207, %v284
    %v288 = vsel %vm61, %v37, 0
    %290 = vmatprep.subr.mxu0 0.0
    %291 = vmatpush1.msra.mxu0 %v288
    %292 = vmatprep.subr.mxu0 0.0
    %293 = vmatpush1.msra.mxu0 0.0
    %294 = vmatprep.subr.mxu0 0.0
    %295 = vmatpush1.msra.mxu0 0.0
    %296 = vmatprep.subr.mxu0 0.0
    %297 = vmatpush1.msra.mxu0 0.0
    %298 = vmatprep.subr.mxu0 0.0
    %299 = vmatpush1.msra.mxu0 0.0
    %300 = vmatprep.subr.mxu0 0.0
    %301 = vmatpush1.msra.mxu0 0.0
    %302 = vmatprep.subr.mxu0 0.0
    %303 = vmatpush1.msra.mxu0 0.0
    %304 = vmatprep.subr.mxu0 0.0
    %305 = vmatpush1.msra.mxu0 0.0
    %306 = vmatprep.subr.mxu0 0.0
    %307 = vmatpush1.msra.mxu0 0.0
    %308 = vmatprep.subr.mxu0 0.0
    %309 = vmatpush1.msra.mxu0 0.0
    %310 = vmatprep.subr.mxu0 0.0
    %311 = vmatpush1.msra.mxu0 0.0
    %312 = vmatprep.subr.mxu0 0.0
    %313 = vmatpush1.msra.mxu0 0.0
    %314 = vmatprep.subr.mxu0 0.0
    %315 = vmatpush1.msra.mxu0 0.0
    %316 = vmatprep.subr.mxu0 0.0
    %317 = vmatpush1.msra.mxu0 0.0
    %318 = vmatprep.subr.mxu0 0.0
    %319 = vmatpush1.msra.mxu0 0.0
    %320 = vmatprep.subr.mxu0 0.0
    %321 = vmatpush1.msra.mxu0 0.0
    %322 = vmatprep.subr.mxu0 0.0
    %323 = vmatpush1.msra.mxu0 0.0
    %324 = vmatprep.subr.mxu0 0.0
    %325 = vmatpush1.msra.mxu0 0.0
    %326 = vmatprep.subr.mxu0 0.0
    %327 = vmatpush1.msra.mxu0 0.0
    %328 = vmatprep.subr.mxu0 0.0
    %329 = vmatpush1.msra.mxu0 0.0
    %330 = vmatprep.subr.mxu0 0.0
    %331 = vmatpush1.msra.mxu0 0.0
    %332 = vmatprep.subr.mxu0 0.0
    %333 = vmatpush1.msra.mxu0 0.0
    %334 = vmatprep.subr.mxu0 0.0
    %335 = vmatpush1.msra.mxu0 0.0
    %336 = vmatprep.subr.mxu0 0.0
    %337 = vmatpush1.msra.mxu0 0.0
    %338 = vmatprep.subr.mxu0 0.0
    %339 = vmatpush1.msra.mxu0 0.0
    %340 = vmatprep.subr.mxu0 0.0
    %341 = vmatpush1.msra.mxu0 0.0
    %342 = vmatprep.subr.mxu0 0.0
    %343 = vmatpush1.msra.mxu0 0.0
    %344 = vmatprep.subr.mxu0 0.0
    %345 = vmatpush1.msra.mxu0 0.0
    %346 = vmatprep.subr.mxu0 0.0
    %347 = vmatpush1.msra.mxu0 0.0
    %348 = vmatprep.subr.mxu0 0.0
    %349 = vmatpush1.msra.mxu0 0.0
    %350 = vmatprep.subr.mxu0 0.0
    %351 = vmatpush1.msra.mxu0 0.0
    %352 = vmatprep.subr.mxu0 0.0
    %353 = vmatpush1.msra.mxu0 0.0
    %354 = vmatprep.mubr.f32.mxu0 0.0
    %355 = vmatmul.mubr.f32.gmra.mrb[0].mxu0 %v59
    %v356 = vpop.f32.mrb[0].mxu0
    %v357 = vadd.f32 0.0, %v356
    %v358 = vpop.f32.mrb[0].mxu0
    %359 = vdwg.mxu0
    %v361 = vsel %vm61, %v51, 0
    %363 = vmatprep.subr.mxu0 0.0
    %364 = vmatpush1.msra.mxu0 %v361
    %365 = vmatprep.subr.mxu0 0.0
    %366 = vmatpush1.msra.mxu0 0.0
    %367 = vmatprep.subr.mxu0 0.0
    %368 = vmatpush1.msra.mxu0 0.0
    %369 = vmatprep.subr.mxu0 0.0
    %370 = vmatpush1.msra.mxu0 0.0
    %371 = vmatprep.subr.mxu0 0.0
    %372 = vmatpush1.msra.mxu0 0.0
    %373 = vmatprep.subr.mxu0 0.0
    %374 = vmatpush1.msra.mxu0 0.0
    %375 = vmatprep.subr.mxu0 0.0
    %376 = vmatpush1.msra.mxu0 0.0
    %377 = vmatprep.subr.mxu0 0.0
    %378 = vmatpush1.msra.mxu0 0.0
    %379 = vmatprep.subr.mxu0 0.0
    %380 = vmatpush1.msra.mxu0 0.0
    %381 = vmatprep.subr.mxu0 0.0
    %382 = vmatpush1.msra.mxu0 0.0
    %383 = vmatprep.subr.mxu0 0.0
    %384 = vmatpush1.msra.mxu0 0.0
    %385 = vmatprep.subr.mxu0 0.0
    %386 = vmatpush1.msra.mxu0 0.0
    %387 = vmatprep.subr.mxu0 0.0
    %388 = vmatpush1.msra.mxu0 0.0
    %389 = vmatprep.subr.mxu0 0.0
    %390 = vmatpush1.msra.mxu0 0.0
    %391 = vmatprep.subr.mxu0 0.0
    %392 = vmatpush1.msra.mxu0 0.0
    %393 = vmatprep.subr.mxu0 0.0
    %394 = vmatpush1.msra.mxu0 0.0
    %395 = vmatprep.subr.mxu0 0.0
    %396 = vmatpush1.msra.mxu0 0.0
    %397 = vmatprep.subr.mxu0 0.0
    %398 = vmatpush1.msra.mxu0 0.0
    %399 = vmatprep.subr.mxu0 0.0
    %400 = vmatpush1.msra.mxu0 0.0
    %401 = vmatprep.subr.mxu0 0.0
    %402 = vmatpush1.msra.mxu0 0.0
    %403 = vmatprep.subr.mxu0 0.0
    %404 = vmatpush1.msra.mxu0 0.0
    %405 = vmatprep.subr.mxu0 0.0
    %406 = vmatpush1.msra.mxu0 0.0
    %407 = vmatprep.subr.mxu0 0.0
    %408 = vmatpush1.msra.mxu0 0.0
    %409 = vmatprep.subr.mxu0 0.0
    %410 = vmatpush1.msra.mxu0 0.0
    %411 = vmatprep.subr.mxu0 0.0
    %412 = vmatpush1.msra.mxu0 0.0
    %413 = vmatprep.subr.mxu0 0.0
    %414 = vmatpush1.msra.mxu0 0.0
    %415 = vmatprep.subr.mxu0 0.0
    %416 = vmatpush1.msra.mxu0 0.0
    %417 = vmatprep.subr.mxu0 0.0
    %418 = vmatpush1.msra.mxu0 0.0
    %419 = vmatprep.subr.mxu0 0.0
    %420 = vmatpush1.msra.mxu0 0.0
    %421 = vmatprep.subr.mxu0 0.0
    %422 = vmatpush1.msra.mxu0 0.0
    %423 = vmatprep.subr.mxu0 0.0
    %424 = vmatpush1.msra.mxu0 0.0
    %425 = vmatprep.subr.mxu0 0.0
    %426 = vmatpush1.msra.mxu0 0.0
    %427 = vmatprep.mubr.f32.mxu0 0.0
    %428 = vmatmul.mubr.f32.gmra.mrb[0].mxu0 %v135
    %v429 = vpop.f32.mrb[0].mxu0
    %v430 = vadd.f32 %v357, %v429
    %v431 = vpop.f32.mrb[0].mxu0
    %432 = vdwg.mxu0
    %433 = vrot.lane.b32.xlu0 %v51, 126
    %v434 = vpop.permute.xlu0 %433
    %v435 = vsel %vm61, %v434, 0
    %437 = vmatprep.subr.mxu0 0.0
    %438 = vmatpush1.msra.mxu0 %v435
    %439 = vmatprep.subr.mxu0 0.0
    %440 = vmatpush1.msra.mxu0 0.0
    %441 = vmatprep.subr.mxu0 0.0
    %442 = vmatpush1.msra.mxu0 0.0
    %443 = vmatprep.subr.mxu0 0.0
    %444 = vmatpush1.msra.mxu0 0.0
    %445 = vmatprep.subr.mxu0 0.0
    %446 = vmatpush1.msra.mxu0 0.0
    %447 = vmatprep.subr.mxu0 0.0
    %448 = vmatpush1.msra.mxu0 0.0
    %449 = vmatprep.subr.mxu0 0.0
    %450 = vmatpush1.msra.mxu0 0.0
    %451 = vmatprep.subr.mxu0 0.0
    %452 = vmatpush1.msra.mxu0 0.0
    %453 = vmatprep.subr.mxu0 0.0
    %454 = vmatpush1.msra.mxu0 0.0
    %455 = vmatprep.subr.mxu0 0.0
    %456 = vmatpush1.msra.mxu0 0.0
    %457 = vmatprep.subr.mxu0 0.0
    %458 = vmatpush1.msra.mxu0 0.0
    %459 = vmatprep.subr.mxu0 0.0
    %460 = vmatpush1.msra.mxu0 0.0
    %461 = vmatprep.subr.mxu0 0.0
    %462 = vmatpush1.msra.mxu0 0.0
    %463 = vmatprep.subr.mxu0 0.0
    %464 = vmatpush1.msra.mxu0 0.0
    %465 = vmatprep.subr.mxu0 0.0
    %466 = vmatpush1.msra.mxu0 0.0
    %467 = vmatprep.subr.mxu0 0.0
    %468 = vmatpush1.msra.mxu0 0.0
    %469 = vmatprep.subr.mxu0 0.0
    %470 = vmatpush1.msra.mxu0 0.0
    %471 = vmatprep.subr.mxu0 0.0
    %472 = vmatpush1.msra.mxu0 0.0
    %473 = vmatprep.subr.mxu0 0.0
    %474 = vmatpush1.msra.mxu0 0.0
    %475 = vmatprep.subr.mxu0 0.0
    %476 = vmatpush1.msra.mxu0 0.0
    %477 = vmatprep.subr.mxu0 0.0
    %478 = vmatpush1.msra.mxu0 0.0
    %479 = vmatprep.subr.mxu0 0.0
    %480 = vmatpush1.msra.mxu0 0.0
    %481 = vmatprep.subr.mxu0 0.0
    %482 = vmatpush1.msra.mxu0 0.0
    %483 = vmatprep.subr.mxu0 0.0
    %484 = vmatpush1.msra.mxu0 0.0
    %485 = vmatprep.subr.mxu0 0.0
    %486 = vmatpush1.msra.mxu0 0.0
    %487 = vmatprep.subr.mxu0 0.0
    %488 = vmatpush1.msra.mxu0 0.0
    %489 = vmatprep.subr.mxu0 0.0
    %490 = vmatpush1.msra.mxu0 0.0
    %491 = vmatprep.subr.mxu0 0.0
    %492 = vmatpush1.msra.mxu0 0.0
    %493 = vmatprep.subr.mxu0 0.0
    %494 = vmatpush1.msra.mxu0 0.0
    %495 = vmatprep.subr.mxu0 0.0
    %496 = vmatpush1.msra.mxu0 0.0
    %497 = vmatprep.subr.mxu0 0.0
    %498 = vmatpush1.msra.mxu0 0.0
    %499 = vmatprep.subr.mxu0 0.0
    %500 = vmatpush1.msra.mxu0 0.0
    %501 = vmatprep.mubr.f32.mxu0 0.0
    %502 = vmatmul.mubr.f32.gmra.mrb[0].mxu0 %v213
    %v503 = vpop.f32.mrb[0].mxu0
    %v504 = vadd.f32 0.0, %v503
    %v505 = vpop.f32.mrb[0].mxu0
    %506 = vdwg.mxu0
    %v507 = vadd.f32 %v430, %v504
    %v508 = vld [vmem:[%s2] sm:$0xff]
    %510 = vset.pattern.permute.xlu0 0
    %511 = vperm.xlu0 %510, %v508
    %v512 = vpop.permute.xlu0 %511
    %v514 = vadd.f32 %v287, %v512
    %v515 = vadd.f32 %v507, %v512
    %vm516 = vcmask 130048
    %v517 = vsel %vm516, %v514, 0.0
    %518 = vadd.xlane.f32.xlu0 %v517
    %v519 = vpop.xlane.xlu0 %518
    %v520 = vsel %vm516, %v515, 0.0
    %521 = vadd.xlane.f32.xlu0 %v520
    %v522 = vpop.xlane.xlu0 %521
    %v523 = vadd.f32 %v519, %v522
    %v524 = vmul.f32 %v523, 0.03125
    %v525 = vsub.f32 %v514, %v524
    %v526 = vsub.f32 %v515, %v524
    %v527 = vmul.f32 %v525, %v525
    %v528 = vmul.f32 %v526, %v526
    %v529 = vsel %vm516, %v527, 0.0
    %530 = vadd.xlane.f32.xlu0 %v529
    %v531 = vpop.xlane.xlu0 %530
    %v532 = vsel %vm516, %v528, 0.0
    %533 = vadd.xlane.f32.xlu0 %v532
    %v534 = vpop.xlane.xlu0 %533
    %v535 = vadd.f32 %v531, %v534
    %v536 = vmul.f32 %v535, 0.03125
    %v537 = vld [vmem:[%s3] sm:$0xff]
    %v538 = vadd.f32 %v536, 1e-05
    %v539 = vrsqrt.pop %v538
    %v540 = vmul.f32 %v537, %v539
    %v541 = vld [vmem:[%s4] sm:$0xff]
    %v542 = vmul.f32 %v524, %v540
    %v543 = vsub.f32 %v541, %v542
    %545 = vset.pattern.permute.xlu0 0
    %546 = vperm.xlu0 %545, %v540
    %v547 = vpop.permute.xlu0 %546
    %v549 = vmul.f32 %v514, %v547
    %v550 = vmul.f32 %v515, %v547
    %552 = vset.pattern.permute.xlu0 0
    %553 = vperm.xlu0 %552, %v543
    %v554 = vpop.permute.xlu0 %553
    %v556 = vadd.f32 %v549, %v554
    %v557 = vadd.f32 %v550, %v554
    %v558 = vmax.f32 %v556, 0.0
    %v559 = vmax.f32 %v557, 0.0
    %562 = vrot.lane.b32.xlu0 %v558, 1
    %v563 = vpop.permute.xlu0 %562
    %564 = vrot.lane.b32.xlu0 %v559, 1
    %v565 = vpop.permute.xlu0 %564
    %v568 = vsel %vm46, 0.0, %v563
    %v569 = vsel %vm46, 0.0, %v565
    %v570 = vsel %vm49, %v568, 0.0
    %v571 = vsel %vm49, %v569, 0.0
    %v572 = vld [vmem:[%s5] sm:$0xff]
    %s573 = scalar_lea.vmem %s5, 8
    %v574 = vld [vmem:[%s573] sm:$0xff]
    %s575 = scalar_lea.vmem %s5, 16
    %v576 = vld [vmem:[%s575] sm:$0xff]
    %vm577 = vcmask 64512
    %v579 = vsel %vm577, %v574, 0
    %581 = vmatprep.subr.mxu0 0.0
    %582 = vmatpush1.msra.mxu0 %v558
    %583 = vmatprep.subr.mxu0 0.0
    %584 = vmatpush1.msra.mxu0 0.0
    %585 = vmatprep.subr.mxu0 0.0
    %586 = vmatpush1.msra.mxu0 0.0
    %587 = vmatprep.subr.mxu0 0.0
    %588 = vmatpush1.msra.mxu0 0.0
    %589 = vmatprep.subr.mxu0 0.0
    %590 = vmatpush1.msra.mxu0 0.0
    %591 = vmatprep.subr.mxu0 0.0
    %592 = vmatpush1.msra.mxu0 0.0
    %593 = vmatprep.subr.mxu0 0.0
    %594 = vmatpush1.msra.mxu0 0.0
    %595 = vmatprep.subr.mxu0 0.0
    %596 = vmatpush1.msra.mxu0 0.0
    %597 = vmatprep.subr.mxu0 0.0
    %598 = vmatpush1.msra.mxu0 0.0
    %599 = vmatprep.subr.mxu0 0.0
    %600 = vmatpush1.msra.mxu0 0.0
    %601 = vmatprep.subr.mxu0 0.0
    %602 = vmatpush1.msra.mxu0 0.0
    %603 = vmatprep.subr.mxu0 0.0
    %604 = vmatpush1.msra.mxu0 0.0
    %605 = vmatprep.subr.mxu0 0.0
    %606 = vmatpush1.msra.mxu0 0.0
    %607 = vmatprep.subr.mxu0 0.0
    %608 = vmatpush1.msra.mxu0 0.0
    %609 = vmatprep.subr.mxu0 0.0
    %610 = vmatpush1.msra.mxu0 0.0
    %611 = vmatprep.subr.mxu0 0.0
    %612 = vmatpush1.msra.mxu0 0.0
    %613 = vmatprep.subr.mxu0 0.0
    %614 = vmatpush1.msra.mxu0 0.0
    %615 = vmatprep.subr.mxu0 0.0
    %616 = vmatpush1.msra.mxu0 0.0
    %617 = vmatprep.subr.mxu0 0.0
    %618 = vmatpush1.msra.mxu0 0.0
    %619 = vmatprep.subr.mxu0 0.0
    %620 = vmatpush1.msra.mxu0 0.0
    %621 = vmatprep.subr.mxu0 0.0
    %622 = vmatpush1.msra.mxu0 0.0
    %623 = vmatprep.subr.mxu0 0.0
    %624 = vmatpush1.msra.mxu0 0.0
    %625 = vmatprep.subr.mxu0 0.0
    %626 = vmatpush1.msra.mxu0 0.0
    %627 = vmatprep.subr.mxu0 0.0
    %628 = vmatpush1.msra.mxu0 0.0
    %629 = vmatprep.subr.mxu0 0.0
    %630 = vmatpush1.msra.mxu0 0.0
    %631 = vmatprep.subr.mxu0 0.0
    %632 = vmatpush1.msra.mxu0 0.0
    %633 = vmatprep.subr.mxu0 0.0
    %634 = vmatpush1.msra.mxu0 0.0
    %635 = vmatprep.subr.mxu0 0.0
    %636 = vmatpush1.msra.mxu0 0.0
    %637 = vmatprep.subr.mxu0 0.0
    %638 = vmatpush1.msra.mxu0 0.0
    %639 = vmatprep.subr.mxu0 0.0
    %640 = vmatpush1.msra.mxu0 0.0
    %641 = vmatprep.subr.mxu0 0.0
    %642 = vmatpush1.msra.mxu0 0.0
    %643 = vmatprep.subr.mxu0 0.0
    %644 = vmatpush1.msra.mxu0 0.0
    %645 = vmatprep.mubr.f32.mxu0 0.0
    %646 = vmatmul.mubr.f32.gmra.mrb[0].mxu0 %v579
    %v647 = vpop.f32.mrb[0].mxu0
    %v648 = vadd.f32 0.0, %v647
    %v649 = vpop.f32.mrb[0].mxu0
    %650 = vdwg.mxu0
    %v652 = vsel %vm577, %v572, 0
    %654 = vmatprep.subr.mxu0 0.0
    %655 = vmatpush1.msra.mxu0 %v570
    %656 = vmatprep.subr.mxu0 0.0
    %657 = vmatpush1.msra.mxu0 0.0
    %658 = vmatprep.subr.mxu0 0.0
    %659 = vmatpush1.msra.mxu0 0.0
    %660 = vmatprep.subr.mxu0 0.0
    %661 = vmatpush1.msra.mxu0 0.0
    %662 = vmatprep.subr.mxu0 0.0
    %663 = vmatpush1.msra.mxu0 0.0
    %664 = vmatprep.subr.mxu0 0.0
    %665 = vmatpush1.msra.mxu0 0.0
    %666 = vmatprep.subr.mxu0 0.0
    %667 = vmatpush1.msra.mxu0 0.0
    %668 = vmatprep.subr.mxu0 0.0
    %669 = vmatpush1.msra.mxu0 0.0
    %670 = vmatprep.subr.mxu0 0.0
    %671 = vmatpush1.msra.mxu0 0.0
    %672 = vmatprep.subr.mxu0 0.0
    %673 = vmatpush1.msra.mxu0 0.0
    %674 = vmatprep.subr.mxu0 0.0
    %675 = vmatpush1.msra.mxu0 0.0
    %676 = vmatprep.subr.mxu0 0.0
    %677 = vmatpush1.msra.mxu0 0.0
    %678 = vmatprep.subr.mxu0 0.0
    %679 = vmatpush1.msra.mxu0 0.0
    %680 = vmatprep.subr.mxu0 0.0
    %681 = vmatpush1.msra.mxu0 0.0
    %682 = vmatprep.subr.mxu0 0.0
    %683 = vmatpush1.msra.mxu0 0.0
    %684 = vmatprep.subr.mxu0 0.0
    %685 = vmatpush1.msra.mxu0 0.0
    %686 = vmatprep.subr.mxu0 0.0
    %687 = vmatpush1.msra.mxu0 0.0
    %688 = vmatprep.subr.mxu0 0.0
    %689 = vmatpush1.msra.mxu0 0.0
    %690 = vmatprep.subr.mxu0 0.0
    %691 = vmatpush1.msra.mxu0 0.0
    %692 = vmatprep.subr.mxu0 0.0
    %693 = vmatpush1.msra.mxu0 0.0
    %694 = vmatprep.subr.mxu0 0.0
    %695 = vmatpush1.msra.mxu0 0.0
    %696 = vmatprep.subr.mxu0 0.0
    %697 = vmatpush1.msra.mxu0 0.0
    %698 = vmatprep.subr.mxu0 0.0
    %699 = vmatpush1.msra.mxu0 0.0
    %700 = vmatprep.subr.mxu0 0.0
    %701 = vmatpush1.msra.mxu0 0.0
    %702 = vmatprep.subr.mxu0 0.0
    %703 = vmatpush1.msra.mxu0 0.0
    %704 = vmatprep.subr.mxu0 0.0
    %705 = vmatpush1.msra.mxu0 0.0
    %706 = vmatprep.subr.mxu0 0.0
    %707 = vmatpush1.msra.mxu0 0.0
    %708 = vmatprep.subr.mxu0 0.0
    %709 = vmatpush1.msra.mxu0 0.0
    %710 = vmatprep.subr.mxu0 0.0
    %711 = vmatpush1.msra.mxu0 0.0
    %712 = vmatprep.subr.mxu0 0.0
    %713 = vmatpush1.msra.mxu0 0.0
    %714 = vmatprep.subr.mxu0 0.0
    %715 = vmatpush1.msra.mxu0 0.0
    %716 = vmatprep.subr.mxu0 0.0
    %717 = vmatpush1.msra.mxu0 0.0
    %718 = vmatprep.mubr.f32.mxu0 0.0
    %719 = vmatmul.mubr.f32.gmra.mrb[0].mxu0 %v652
    %v720 = vpop.f32.mrb[0].mxu0
    %v721 = vadd.f32 %v648, %v720
    %v722 = vpop.f32.mrb[0].mxu0
    %723 = vdwg.mxu0
    %725 = vrot.lane.b32.xlu0 %v570, 126
    %v726 = vpop.permute.xlu0 %725
    %v729 = vsel %vm577, %v576, 0
    %731 = vmatprep.subr.mxu0 0.0
    %732 = vmatpush1.msra.mxu0 %v726
    %733 = vmatprep.subr.mxu0 0.0
    %734 = vmatpush1.msra.mxu0 0.0
    %735 = vmatprep.subr.mxu0 0.0
    %736 = vmatpush1.msra.mxu0 0.0
    %737 = vmatprep.subr.mxu0 0.0
    %738 = vmatpush1.msra.mxu0 0.0
    %739 = vmatprep.subr.mxu0 0.0
    %740 = vmatpush1.msra.mxu0 0.0
    %741 = vmatprep.subr.mxu0 0.0
    %742 = vmatpush1.msra.mxu0 0.0
    %743 = vmatprep.subr.mxu0 0.0
    %744 = vmatpush1.msra.mxu0 0.0
    %745 = vmatprep.subr.mxu0 0.0
    %746 = vmatpush1.msra.mxu0 0.0
    %747 = vmatprep.subr.mxu0 0.0
    %748 = vmatpush1.msra.mxu0 0.0
    %749 = vmatprep.subr.mxu0 0.0
    %750 = vmatpush1.msra.mxu0 0.0
    %751 = vmatprep.subr.mxu0 0.0
    %752 = vmatpush1.msra.mxu0 0.0
    %753 = vmatprep.subr.mxu0 0.0
    %754 = vmatpush1.msra.mxu0 0.0
    %755 = vmatprep.subr.mxu0 0.0
    %756 = vmatpush1.msra.mxu0 0.0
    %757 = vmatprep.subr.mxu0 0.0
    %758 = vmatpush1.msra.mxu0 0.0
    %759 = vmatprep.subr.mxu0 0.0
    %760 = vmatpush1.msra.mxu0 0.0
    %761 = vmatprep.subr.mxu0 0.0
    %762 = vmatpush1.msra.mxu0 0.0
    %763 = vmatprep.subr.mxu0 0.0
    %764 = vmatpush1.msra.mxu0 0.0
    %765 = vmatprep.subr.mxu0 0.0
    %766 = vmatpush1.msra.mxu0 0.0
    %767 = vmatprep.subr.mxu0 0.0
    %768 = vmatpush1.msra.mxu0 0.0
    %769 = vmatprep.subr.mxu0 0.0
    %770 = vmatpush1.msra.mxu0 0.0
    %771 = vmatprep.subr.mxu0 0.0
    %772 = vmatpush1.msra.mxu0 0.0
    %773 = vmatprep.subr.mxu0 0.0
    %774 = vmatpush1.msra.mxu0 0.0
    %775 = vmatprep.subr.mxu0 0.0
    %776 = vmatpush1.msra.mxu0 0.0
    %777 = vmatprep.subr.mxu0 0.0
    %778 = vmatpush1.msra.mxu0 0.0
    %779 = vmatprep.subr.mxu0 0.0
    %780 = vmatpush1.msra.mxu0 0.0
    %781 = vmatprep.subr.mxu0 0.0
    %782 = vmatpush1.msra.mxu0 0.0
    %783 = vmatprep.subr.mxu0 0.0
    %784 = vmatpush1.msra.mxu0 0.0
    %785 = vmatprep.subr.mxu0 0.0
    %786 = vmatpush1.msra.mxu0 0.0
    %787 = vmatprep.subr.mxu0 0.0
    %788 = vmatpush1.msra.mxu0 0.0
    %789 = vmatprep.subr.mxu0 0.0
    %790 = vmatpush1.msra.mxu0 0.0
    %791 = vmatprep.subr.mxu0 0.0
    %792 = vmatpush1.msra.mxu0 0.0
    %793 = vmatprep.subr.mxu0 0.0
    %794 = vmatpush1.msra.mxu0 0.0
    %795 = vmatprep.mubr.f32.mxu0 0.0
    %796 = vmatmul.mubr.f32.gmra.mrb[0].mxu0 %v729
    %v797 = vpop.f32.mrb[0].mxu0
    %v798 = vadd.f32 0.0, %v797
    %v799 = vpop.f32.mrb[0].mxu0
    %800 = vdwg.mxu0
    %v801 = vadd.f32 %v721, %v798
    %802 = vmatprep.subr.mxu0 0.0
    %803 = vmatpush1.msra.mxu0 %v559
    %804 = vmatprep.subr.mxu0 0.0
    %805 = vmatpush1.msra.mxu0 0.0
    %806 = vmatprep.subr.mxu0 0.0
    %807 = vmatpush1.msra.mxu0 0.0
    %808 = vmatprep.subr.mxu0 0.0
    %809 = vmatpush1.msra.mxu0 0.0
    %810 = vmatprep.subr.mxu0 0.0
    %811 = vmatpush1.msra.mxu0 0.0
    %812 = vmatprep.subr.mxu0 0.0
    %813 = vmatpush1.msra.mxu0 0.0
    %814 = vmatprep.subr.mxu0 0.0
    %815 = vmatpush1.msra.mxu0 0.0
    %816 = vmatprep.subr.mxu0 0.0
    %817 = vmatpush1.msra.mxu0 0.0
    %818 = vmatprep.subr.mxu0 0.0
    %819 = vmatpush1.msra.mxu0 0.0
    %820 = vmatprep.subr.mxu0 0.0
    %821 = vmatpush1.msra.mxu0 0.0
    %822 = vmatprep.subr.mxu0 0.0
    %823 = vmatpush1.msra.mxu0 0.0
    %824 = vmatprep.subr.mxu0 0.0
    %825 = vmatpush1.msra.mxu0 0.0
    %826 = vmatprep.subr.mxu0 0.0
    %827 = vmatpush1.msra.mxu0 0.0
    %828 = vmatprep.subr.mxu0 0.0
    %829 = vmatpush1.msra.mxu0 0.0
    %830 = vmatprep.subr.mxu0 0.0
    %831 = vmatpush1.msra.mxu0 0.0
    %832 = vmatprep.subr.mxu0 0.0
    %833 = vmatpush1.msra.mxu0 0.0
    %834 = vmatprep.subr.mxu0 0.0
    %835 = vmatpush1.msra.mxu0 0.0
    %836 = vmatprep.subr.mxu0 0.0
    %837 = vmatpush1.msra.mxu0 0.0
    %838 = vmatprep.subr.mxu0 0.0
    %839 = vmatpush1.msra.mxu0 0.0
    %840 = vmatprep.subr.mxu0 0.0
    %841 = vmatpush1.msra.mxu0 0.0
    %842 = vmatprep.subr.mxu0 0.0
    %843 = vmatpush1.msra.mxu0 0.0
    %844 = vmatprep.subr.mxu0 0.0
    %845 = vmatpush1.msra.mxu0 0.0
    %846 = vmatprep.subr.mxu0 0.0
    %847 = vmatpush1.msra.mxu0 0.0
    %848 = vmatprep.subr.mxu0 0.0
    %849 = vmatpush1.msra.mxu0 0.0
    %850 = vmatprep.subr.mxu0 0.0
    %851 = vmatpush1.msra.mxu0 0.0
    %852 = vmatprep.subr.mxu0 0.0
    %853 = vmatpush1.msra.mxu0 0.0
    %854 = vmatprep.subr.mxu0 0.0
    %855 = vmatpush1.msra.mxu0 0.0
    %856 = vmatprep.subr.mxu0 0.0
    %857 = vmatpush1.msra.mxu0 0.0
    %858 = vmatprep.subr.mxu0 0.0
    %859 = vmatpush1.msra.mxu0 0.0
    %860 = vmatprep.subr.mxu0 0.0
    %861 = vmatpush1.msra.mxu0 0.0
    %862 = vmatprep.subr.mxu0 0.0
    %863 = vmatpush1.msra.mxu0 0.0
    %864 = vmatprep.subr.mxu0 0.0
    %865 = vmatpush1.msra.mxu0 0.0
    %866 = vmatprep.mubr.f32.mxu0 0.0
    %867 = vmatmul.mubr.f32.gmra.mrb[0].mxu0 %v579
    %v868 = vpop.f32.mrb[0].mxu0
    %v869 = vadd.f32 0.0, %v868
    %v870 = vpop.f32.mrb[0].mxu0
    %871 = vdwg.mxu0
    %872 = vmatprep.subr.mxu0 0.0
    %873 = vmatpush1.msra.mxu0 %v571
    %874 = vmatprep.subr.mxu0 0.0
    %875 = vmatpush1.msra.mxu0 0.0
    %876 = vmatprep.subr.mxu0 0.0
    %877 = vmatpush1.msra.mxu0 0.0
    %878 = vmatprep.subr.mxu0 0.0
    %879 = vmatpush1.msra.mxu0 0.0
    %880 = vmatprep.subr.mxu0 0.0
    %881 = vmatpush1.msra.mxu0 0.0
    %882 = vmatprep.subr.mxu0 0.0
    %883 = vmatpush1.msra.mxu0 0.0
    %884 = vmatprep.subr.mxu0 0.0
    %885 = vmatpush1.msra.mxu0 0.0
    %886 = vmatprep.subr.mxu0 0.0
    %887 = vmatpush1.msra.mxu0 0.0
    %888 = vmatprep.subr.mxu0 0.0
    %889 = vmatpush1.msra.mxu0 0.0
    %890 = vmatprep.subr.mxu0 0.0
    %891 = vmatpush1.msra.mxu0 0.0
    %892 = vmatprep.subr.mxu0 0.0
    %893 = vmatpush1.msra.mxu0 0.0
    %894 = vmatprep.subr.mxu0 0.0
    %895 = vmatpush1.msra.mxu0 0.0
    %896 = vmatprep.subr.mxu0 0.0
    %897 = vmatpush1.msra.mxu0 0.0
    %898 = vmatprep.subr.mxu0 0.0
    %899 = vmatpush1.msra.mxu0 0.0
    %900 = vmatprep.subr.mxu0 0.0
    %901 = vmatpush1.msra.mxu0 0.0
    %902 = vmatprep.subr.mxu0 0.0
    %903 = vmatpush1.msra.mxu0 0.0
    %904 = vmatprep.subr.mxu0 0.0
    %905 = vmatpush1.msra.mxu0 0.0
    %906 = vmatprep.subr.mxu0 0.0
    %907 = vmatpush1.msra.mxu0 0.0
    %908 = vmatprep.subr.mxu0 0.0
    %909 = vmatpush1.msra.mxu0 0.0
    %910 = vmatprep.subr.mxu0 0.0
    %911 = vmatpush1.msra.mxu0 0.0
    %912 = vmatprep.subr.mxu0 0.0
    %913 = vmatpush1.msra.mxu0 0.0
    %914 = vmatprep.subr.mxu0 0.0
    %915 = vmatpush1.msra.mxu0 0.0
    %916 = vmatprep.subr.mxu0 0.0
    %917 = vmatpush1.msra.mxu0 0.0
    %918 = vmatprep.subr.mxu0 0.0
    %919 = vmatpush1.msra.mxu0 0.0
    %920 = vmatprep.subr.mxu0 0.0
    %921 = vmatpush1.msra.mxu0 0.0
    %922 = vmatprep.subr.mxu0 0.0
    %923 = vmatpush1.msra.mxu0 0.0
    %924 = vmatprep.subr.mxu0 0.0
    %925 = vmatpush1.msra.mxu0 0.0
    %926 = vmatprep.subr.mxu0 0.0
    %927 = vmatpush1.msra.mxu0 0.0
    %928 = vmatprep.subr.mxu0 0.0
    %929 = vmatpush1.msra.mxu0 0.0
    %930 = vmatprep.subr.mxu0 0.0
    %931 = vmatpush1.msra.mxu0 0.0
    %932 = vmatprep.subr.mxu0 0.0
    %933 = vmatpush1.msra.mxu0 0.0
    %934 = vmatprep.subr.mxu0 0.0
    %935 = vmatpush1.msra.mxu0 0.0
    %936 = vmatprep.mubr.f32.mxu0 0.0
    %937 = vmatmul.mubr.f32.gmra.mrb[0].mxu0 %v652
    %v938 = vpop.f32.mrb[0].mxu0
    %v939 = vadd.f32 %v869, %v938
    %v940 = vpop.f32.mrb[0].mxu0
    %941 = vdwg.mxu0
    %943 = vrot.lane.b32.xlu0 %v571, 126
    %v944 = vpop.permute.xlu0 %943
    %946 = vmatprep.subr.mxu0 0.0
    %947 = vmatpush1.msra.mxu0 %v944
    %948 = vmatprep.subr.mxu0 0.0
    %949 = vmatpush1.msra.mxu0 0.0
    %950 = vmatprep.subr.mxu0 0.0
    %951 = vmatpush1.msra.mxu0 0.0
    %952 = vmatprep.subr.mxu0 0.0
    %953 = vmatpush1.msra.mxu0 0.0
    %954 = vmatprep.subr.mxu0 0.0
    %955 = vmatpush1.msra.mxu0 0.0
    %956 = vmatprep.subr.mxu0 0.0
    %957 = vmatpush1.msra.mxu0 0.0
    %958 = vmatprep.subr.mxu0 0.0
    %959 = vmatpush1.msra.mxu0 0.0
    %960 = vmatprep.subr.mxu0 0.0
    %961 = vmatpush1.msra.mxu0 0.0
    %962 = vmatprep.subr.mxu0 0.0
    %963 = vmatpush1.msra.mxu0 0.0
    %964 = vmatprep.subr.mxu0 0.0
    %965 = vmatpush1.msra.mxu0 0.0
    %966 = vmatprep.subr.mxu0 0.0
    %967 = vmatpush1.msra.mxu0 0.0
    %968 = vmatprep.subr.mxu0 0.0
    %969 = vmatpush1.msra.mxu0 0.0
    %970 = vmatprep.subr.mxu0 0.0
    %971 = vmatpush1.msra.mxu0 0.0
    %972 = vmatprep.subr.mxu0 0.0
    %973 = vmatpush1.msra.mxu0 0.0
    %974 = vmatprep.subr.mxu0 0.0
    %975 = vmatpush1.msra.mxu0 0.0
    %976 = vmatprep.subr.mxu0 0.0
    %977 = vmatpush1.msra.mxu0 0.0
    %978 = vmatprep.subr.mxu0 0.0
    %979 = vmatpush1.msra.mxu0 0.0
    %980 = vmatprep.subr.mxu0 0.0
    %981 = vmatpush1.msra.mxu0 0.0
    %982 = vmatprep.subr.mxu0 0.0
    %983 = vmatpush1.msra.mxu0 0.0
    %984 = vmatprep.subr.mxu0 0.0
    %985 = vmatpush1.msra.mxu0 0.0
    %986 = vmatprep.subr.mxu0 0.0
    %987 = vmatpush1.msra.mxu0 0.0
    %988 = vmatprep.subr.mxu0 0.0
    %989 = vmatpush1.msra.mxu0 0.0
    %990 = vmatprep.subr.mxu0 0.0
    %991 = vmatpush1.msra.mxu0 0.0
    %992 = vmatprep.subr.mxu0 0.0
    %993 = vmatpush1.msra.mxu0 0.0
    %994 = vmatprep.subr.mxu0 0.0
    %995 = vmatpush1.msra.mxu0 0.0
    %996 = vmatprep.subr.mxu0 0.0
    %997 = vmatpush1.msra.mxu0 0.0
    %998 = vmatprep.subr.mxu0 0.0
    %999 = vmatpush1.msra.mxu0 0.0
    %1000 = vmatprep.subr.mxu0 0.0
    %1001 = vmatpush1.msra.mxu0 0.0
    %1002 = vmatprep.subr.mxu0 0.0
    %1003 = vmatpush1.msra.mxu0 0.0
    %1004 = vmatprep.subr.mxu0 0.0
    %1005 = vmatpush1.msra.mxu0 0.0
    %1006 = vmatprep.subr.mxu0 0.0
    %1007 = vmatpush1.msra.mxu0 0.0
    %1008 = vmatprep.subr.mxu0 0.0
    %1009 = vmatpush1.msra.mxu0 0.0
    %1010 = vmatprep.mubr.f32.mxu0 0.0
    %1011 = vmatmul.mubr.f32.gmra.mrb[0].mxu0 %v729
    %v1012 = vpop.f32.mrb[0].mxu0
    %v1013 = vadd.f32 0.0, %v1012
    %v1014 = vpop.f32.mrb[0].mxu0
    %1015 = vdwg.mxu0
    %v1016 = vadd.f32 %v939, %v1013
    %v1017 = vld [vmem:[%s6] sm:$0xff]
    %1019 = vset.pattern.permute.xlu0 0
    %1020 = vperm.xlu0 %1019, %v1017
    %v1021 = vpop.permute.xlu0 %1020
    %v1023 = vadd.f32 %v801, %v1021
    %v1024 = vadd.f32 %v1016, %v1021
    %v1025 = vsel %vm516, %v1023, 0.0
    %1026 = vadd.xlane.f32.xlu0 %v1025
    %v1027 = vpop.xlane.xlu0 %1026
    %v1028 = vsel %vm516, %v1024, 0.0
    %1029 = vadd.xlane.f32.xlu0 %v1028
    %v1030 = vpop.xlane.xlu0 %1029
    %v1031 = vadd.f32 %v1027, %v1030
    %v1032 = vmul.f32 %v1031, 0.03125
    %v1033 = vsub.f32 %v1023, %v1032
    %v1034 = vsub.f32 %v1024, %v1032
    %v1035 = vmul.f32 %v1033, %v1033
    %v1036 = vmul.f32 %v1034, %v1034
    %v1037 = vsel %vm516, %v1035, 0.0
    %1038 = vadd.xlane.f32.xlu0 %v1037
    %v1039 = vpop.xlane.xlu0 %1038
    %v1040 = vsel %vm516, %v1036, 0.0
    %1041 = vadd.xlane.f32.xlu0 %v1040
    %v1042 = vpop.xlane.xlu0 %1041
    %v1043 = vadd.f32 %v1039, %v1042
    %v1044 = vmul.f32 %v1043, 0.03125
    %v1045 = vld [vmem:[%s7] sm:$0xff]
    %v1046 = vadd.f32 %v1044, 1e-05
    %v1047 = vrsqrt.pop %v1046
    %v1048 = vmul.f32 %v1045, %v1047
    %v1049 = vld [vmem:[%s8] sm:$0xff]
    %v1050 = vmul.f32 %v1032, %v1048
    %v1051 = vsub.f32 %v1049, %v1050
    %1053 = vset.pattern.permute.xlu0 0
    %1054 = vperm.xlu0 %1053, %v1048
    %v1055 = vpop.permute.xlu0 %1054
    %v1057 = vmul.f32 %v1023, %v1055
    %v1058 = vmul.f32 %v1024, %v1055
    %1060 = vset.pattern.permute.xlu0 0
    %1061 = vperm.xlu0 %1060, %v1051
    %v1062 = vpop.permute.xlu0 %1061
    %v1064 = vadd.f32 %v1057, %v1062
    %v1065 = vadd.f32 %v1058, %v1062
    %v1066 = vmax.f32 %v1064, 0.0
    %v1067 = vmax.f32 %v1065, 0.0
    %v1068 = vlaneseq
    %v1069 = vshrl.u32 %v1068, 7
    %v1070 = vadd.s32 %v1069, 8
    %v1071 = vlaneseq
    %v1072 = vand.u32 %v1071, 127
    %v1073 = vmul.u32 %v1072, 2
    %vm1074 = vcmp.eq.s32.totalorder %v1069, %v1073
    %vm1075 = vcmp.eq.s32.totalorder %v1070, %v1073
    %v1076 = vsel %vm1074, 1, 0
    %v1077 = vsel %vm1075, 1, 0
    %v1078 = vcvt.s32.f32 %v1076
    %v1079 = vcvt.s32.f32 %v1077
    %v1080 = vadd.s32 %v1073, 1
    %vm1081 = vcmp.eq.s32.totalorder %v1069, %v1080
    %vm1082 = vcmp.eq.s32.totalorder %v1070, %v1080
    %v1083 = vsel %vm1081, 1, 0
    %v1084 = vsel %vm1082, 1, 0
    %v1085 = vcvt.s32.f32 %v1083
    %v1086 = vcvt.s32.f32 %v1084
    %v1088 = vsel %vm516, %v1066, 0
    %v1091 = vsel %vm516, %v1067, 0
    %1093 = vmatprep.subr.mxu0 0.0
    %1094 = vmatpush1.msra.mxu0 %v1078
    %1095 = vmatprep.subr.mxu0 0.0
    %1096 = vmatpush1.msra.mxu0 %v1079
    %1097 = vmatprep.subr.mxu0 0.0
    %1098 = vmatpush1.msra.mxu0 0.0
    %1099 = vmatprep.subr.mxu0 0.0
    %1100 = vmatpush1.msra.mxu0 0.0
    %1101 = vmatprep.subr.mxu0 0.0
    %1102 = vmatpush1.msra.mxu0 0.0
    %1103 = vmatprep.subr.mxu0 0.0
    %1104 = vmatpush1.msra.mxu0 0.0
    %1105 = vmatprep.subr.mxu0 0.0
    %1106 = vmatpush1.msra.mxu0 0.0
    %1107 = vmatprep.subr.mxu0 0.0
    %1108 = vmatpush1.msra.mxu0 0.0
    %1109 = vmatprep.subr.mxu0 0.0
    %1110 = vmatpush1.msra.mxu0 0.0
    %1111 = vmatprep.subr.mxu0 0.0
    %1112 = vmatpush1.msra.mxu0 0.0
    %1113 = vmatprep.subr.mxu0 0.0
    %1114 = vmatpush1.msra.mxu0 0.0
    %1115 = vmatprep.subr.mxu0 0.0
    %1116 = vmatpush1.msra.mxu0 0.0
    %1117 = vmatprep.subr.mxu0 0.0
    %1118 = vmatpush1.msra.mxu0 0.0
    %1119 = vmatprep.subr.mxu0 0.0
    %1120 = vmatpush1.msra.mxu0 0.0
    %1121 = vmatprep.subr.mxu0 0.0
    %1122 = vmatpush1.msra.mxu0 0.0
    %1123 = vmatprep.subr.mxu0 0.0
    %1124 = vmatpush1.msra.mxu0 0.0
    %1125 = vmatprep.subr.mxu0 0.0
    %1126 = vmatpush1.msra.mxu0 0.0
    %1127 = vmatprep.subr.mxu0 0.0
    %1128 = vmatpush1.msra.mxu0 0.0
    %1129 = vmatprep.subr.mxu0 0.0
    %1130 = vmatpush1.msra.mxu0 0.0
    %1131 = vmatprep.subr.mxu0 0.0
    %1132 = vmatpush1.msra.mxu0 0.0
    %1133 = vmatprep.subr.mxu0 0.0
    %1134 = vmatpush1.msra.mxu0 0.0
    %1135 = vmatprep.subr.mxu0 0.0
    %1136 = vmatpush1.msra.mxu0 0.0
    %1137 = vmatprep.subr.mxu0 0.0
    %1138 = vmatpush1.msra.mxu0 0.0
    %1139 = vmatprep.subr.mxu0 0.0
    %1140 = vmatpush1.msra.mxu0 0.0
    %1141 = vmatprep.subr.mxu0 0.0
    %1142 = vmatpush1.msra.mxu0 0.0
    %1143 = vmatprep.subr.mxu0 0.0
    %1144 = vmatpush1.msra.mxu0 0.0
    %1145 = vmatprep.subr.mxu0 0.0
    %1146 = vmatpush1.msra.mxu0 0.0
    %1147 = vmatprep.subr.mxu0 0.0
    %1148 = vmatpush1.msra.mxu0 0.0
    %1149 = vmatprep.subr.mxu0 0.0
    %1150 = vmatpush1.msra.mxu0 0.0
    %1151 = vmatprep.subr.mxu0 0.0
    %1152 = vmatpush1.msra.mxu0 0.0
    %1153 = vmatprep.subr.mxu0 0.0
    %1154 = vmatpush1.msra.mxu0 0.0
    %1155 = vmatprep.subr.mxu0 0.0
    %1156 = vmatpush1.msra.mxu0 0.0
    %1157 = vmatprep.mubr.f32.mxu0 0.0
    %1158 = vmatmul.mubr.f32.gmra.mrb[0].mxu0 %v1088
    %v1159 = vpop.f32.mrb[0].mxu0
    %v1160 = vadd.f32 0.0, %v1159
    %v1161 = vpop.f32.mrb[0].mxu0
    %1162 = vmatprep.mubr.f32.mxu0 0.0
    %1163 = vmatmul.mubr.f32.gmra.mrb[0].mxu0 %v1091
    %v1164 = vpop.f32.mrb[0].mxu0
    %v1165 = vadd.f32 0.0, %v1164
    %v1166 = vpop.f32.mrb[0].mxu0
    %1167 = vdwg.mxu0
    %1168 = vmatprep.subr.mxu0 0.0
    %1169 = vmatpush1.msra.mxu0 %v1085
    %1170 = vmatprep.subr.mxu0 0.0
    %1171 = vmatpush1.msra.mxu0 %v1086
    %1172 = vmatprep.subr.mxu0 0.0
    %1173 = vmatpush1.msra.mxu0 0.0
    %1174 = vmatprep.subr.mxu0 0.0
    %1175 = vmatpush1.msra.mxu0 0.0
    %1176 = vmatprep.subr.mxu0 0.0
    %1177 = vmatpush1.msra.mxu0 0.0
    %1178 = vmatprep.subr.mxu0 0.0
    %1179 = vmatpush1.msra.mxu0 0.0
    %1180 = vmatprep.subr.mxu0 0.0
    %1181 = vmatpush1.msra.mxu0 0.0
    %1182 = vmatprep.subr.mxu0 0.0
    %1183 = vmatpush1.msra.mxu0 0.0
    %1184 = vmatprep.subr.mxu0 0.0
    %1185 = vmatpush1.msra.mxu0 0.0
    %1186 = vmatprep.subr.mxu0 0.0
    %1187 = vmatpush1.msra.mxu0 0.0
    %1188 = vmatprep.subr.mxu0 0.0
    %1189 = vmatpush1.msra.mxu0 0.0
    %1190 = vmatprep.subr.mxu0 0.0
    %1191 = vmatpush1.msra.mxu0 0.0
    %1192 = vmatprep.subr.mxu0 0.0
    %1193 = vmatpush1.msra.mxu0 0.0
    %1194 = vmatprep.subr.mxu0 0.0
    %1195 = vmatpush1.msra.mxu0 0.0
    %1196 = vmatprep.subr.mxu0 0.0
    %1197 = vmatpush1.msra.mxu0 0.0
    %1198 = vmatprep.subr.mxu0 0.0
    %1199 = vmatpush1.msra.mxu0 0.0
    %1200 = vmatprep.subr.mxu0 0.0
    %1201 = vmatpush1.msra.mxu0 0.0
    %1202 = vmatprep.subr.mxu0 0.0
    %1203 = vmatpush1.msra.mxu0 0.0
    %1204 = vmatprep.subr.mxu0 0.0
    %1205 = vmatpush1.msra.mxu0 0.0
    %1206 = vmatprep.subr.mxu0 0.0
    %1207 = vmatpush1.msra.mxu0 0.0
    %1208 = vmatprep.subr.mxu0 0.0
    %1209 = vmatpush1.msra.mxu0 0.0
    %1210 = vmatprep.subr.mxu0 0.0
    %1211 = vmatpush1.msra.mxu0 0.0
    %1212 = vmatprep.subr.mxu0 0.0
    %1213 = vmatpush1.msra.mxu0 0.0
    %1214 = vmatprep.subr.mxu0 0.0
    %1215 = vmatpush1.msra.mxu0 0.0
    %1216 = vmatprep.subr.mxu0 0.0
    %1217 = vmatpush1.msra.mxu0 0.0
    %1218 = vmatprep.subr.mxu0 0.0
    %1219 = vmatpush1.msra.mxu0 0.0
    %1220 = vmatprep.subr.mxu0 0.0
    %1221 = vmatpush1.msra.mxu0 0.0
    %1222 = vmatprep.subr.mxu0 0.0
    %1223 = vmatpush1.msra.mxu0 0.0
    %1224 = vmatprep.subr.mxu0 0.0
    %1225 = vmatpush1.msra.mxu0 0.0
    %1226 = vmatprep.subr.mxu0 0.0
    %1227 = vmatpush1.msra.mxu0 0.0
    %1228 = vmatprep.subr.mxu0 0.0
    %1229 = vmatpush1.msra.mxu0 0.0
    %1230 = vmatprep.subr.mxu0 0.0
    %1231 = vmatpush1.msra.mxu0 0.0
    %1232 = vmatprep.mubr.f32.mxu0 0.0
    %1233 = vmatmul.mubr.f32.gmra.mrb[0].mxu0 %v1088
    %v1234 = vpop.f32.mrb[0].mxu0
    %v1235 = vadd.f32 0.0, %v1234
    %v1236 = vpop.f32.mrb[0].mxu0
    %1237 = vmatprep.mubr.f32.mxu0 0.0
    %1238 = vmatmul.mubr.f32.gmra.mrb[0].mxu0 %v1091
    %v1239 = vpop.f32.mrb[0].mxu0
    %v1240 = vadd.f32 0.0, %v1239
    %v1241 = vpop.f32.mrb[0].mxu0
    %1242 = vdwg.mxu0
    %vm1243 = vcmp.ge.f32.partialorder %v1160, %v1235
    %vm1244 = vcmp.ge.f32.partialorder %v1165, %v1240
    %v1245 = vsel %vm1243, %v1160, %v1235
    %v1246 = vsel %vm1244, %v1165, %v1240
    %1247 = vst.msk [vmem:[#allocation2] sm:$0xff] %vm577, %v1245
    %1248 = vst.msk [vmem:[#allocation2 + $0x8] sm:$0xff] %vm577, %v1246
    %v1249 = vsel %vm1243, 1, 0
    %v1250 = vsel %vm1244, 1, 0
    %v1251 = vsub.s32 1, %v1249
    %v1252 = vsub.s32 1, %v1250
    %v1253 = vadd.s32 %v1073, %v1251
    %v1254 = vadd.s32 %v1073, %v1252
    %1255 = vst.msk [vmem:[#allocation4] sm:$0xff] %vm577, %v1253
    %1256 = vst.msk [vmem:[#allocation4 + $0x8] sm:$0xff] %vm577, %v1254
    // Predicated region
    $region38: #{tpu_custom_call.1} parent=1 // pred_check
      _
    $region39: #{tpu_custom_call.1} parent=1 // pred_check_branch
      %1258 = sbr.rel (0) target = $region41
    $region40: #{tpu_custom_call.1} parent=1 // pred_region
      %s1260 = ssub.s32 256, 256
      %1261 = vsyncadd [#allocation3], %s1260
      %s1262 = sshll.u32 [#allocation2], 4
      %s1263 = int_to_ptr.vmem [resolvable:$true] %s1262
      %1268 = dma.vmem_to_hbm [thread:$0]  %s1263, 256, %s9, [#allocation3], 128, 128, 8
    $region41: #{tpu_custom_call.1} parent=1 // pred_fallthru
      _
    // Predicated region
    $region42: #{tpu_custom_call.1} parent=1 // pred_check
      _
    $region43: #{tpu_custom_call.1} parent=1 // pred_check_branch
      %1270 = sbr.rel (0) target = $region45
    $region44: #{tpu_custom_call.1} parent=1 // pred_region
      %s1272 = ssub.s32 256, 256
      %1273 = vsyncadd [#allocation5], %s1272
      %s1274 = sshll.u32 [#allocation4], 4
      %s1275 = int_to_ptr.vmem [resolvable:$true] %s1274
      %1280 = dma.vmem_to_hbm [thread:$0]  %s1275, 256, %s10, [#allocation5], 128, 128, 8
    $region45: #{tpu_custom_call.1} parent=1 // pred_fallthru
      _
    // Predicated region
    $region46: #{tpu_custom_call.1} parent=1 // pred_check
      _
    $region47: #{tpu_custom_call.1} parent=1 // pred_check_branch
      %1282 = sbr.rel (0) target = $region49
    $region48: #{tpu_custom_call.1} parent=1 // pred_region
      %1283 = dma.done [#allocation3], 256
    $region49: #{tpu_custom_call.1} parent=1 // pred_fallthru
      _
    // Predicated region
    $region50: #{tpu_custom_call.1} parent=1 // pred_check
      _
    $region51: #{tpu_custom_call.1} parent=1 // pred_check_branch
      %1285 = sbr.rel (0) target = $region53
    $region52: #{tpu_custom_call.1} parent=1 // pred_region
      %1286 = dma.done [#allocation5], 256
    $region53: #{tpu_custom_call.1} parent=1 // pred_fallthru
      _
    %1287 = vsyncpa [#allocation3], 1
    %1288 = vsyncpa [#allocation5], 1

</llo_original>
